<compile_context>
chip_gen: v5e
topology: v5e:2x2
jax: 0.10.0
libtpu: 0.0.40
codegen_flags: <defaults>
</compile_context>

<pallas_src>
import jax
import jax.numpy as jnp
import numpy as np
from jax.experimental import pallas as pl
from jax.experimental.pallas import tpu as pltpu


def _round_up(x, m):
    return ((x + m - 1) // m) * m


# ----------------------------- fused Pallas kernel -----------------------------

def _make_fused_kernel(plan, HP, UH, mxu_dtype):
    """plan: static list of (arity, num_tuples), one entry per active relation."""
    R = len(plan)

    def kernel(*refs):
        idx_refs = refs[:R]                                   # SMEM int32 (scalar prefetch)
        it = iter(refs[R:])
        ns_ref = next(it)                                     # (NP, HP) node states
        rel_refs = [tuple(next(it) for _ in range(4)) for _ in plan]   # w1,b1,w2,b2
        wv_ref, u1_ref, ub1_ref, u2_ref, ub2_ref = (next(it) for _ in range(5))
        o_ref = next(it)                                      # (NP, HP) output
        msg_ref = next(it)                                    # (NP, HP) VMEM accumulator
        gath_refs = [next(it) for _ in plan]                  # (T, arity*HP) staging

        def mm(a, b):                                         # MXU matmul, f32 accumulate
            return jnp.dot(a.astype(mxu_dtype), b.astype(mxu_dtype),
                           preferred_element_type=jnp.float32)

        msg_ref[...] = jnp.zeros_like(msg_ref)

        # ---- per-relation message MLPs (static loop; weights VMEM-resident) ----
        for r, (arity, T) in enumerate(plan):
            idx_ref = idx_refs[r]
            w1_ref, b1_ref, w2_ref, b2_ref = rel_refs[r]
            g_ref = gath_refs[r]

            # Indexed row gather: SMEM scalar index -> dynamic sublane load.
            # Lane offsets are static multiples of 128 (aligned stores).
            for t in range(T):
                for p in range(arity):
                    nidx = idx_ref[t * arity + p]
                    g_ref[t:t + 1, p * HP:(p + 1) * HP] = ns_ref[pl.ds(nidx, 1), :]

            # One wide MLP per relation (single W1 / single W2 matmul).
            x = g_ref[...]                                    # (T, arity*HP)
            h = jnp.maximum(mm(x, w1_ref[...]) + b1_ref[...], 0.0)
            out = mm(h, w2_ref[...]) + b2_ref[...]            # (T, arity*HP)

            # Per-row scatter-add into the VMEM message accumulator.
            for t in range(T):
                for p in range(arity):
                    nidx = idx_ref[t * arity + p]
                    row = out[t:t + 1, p * HP:(p + 1) * HP]   # (1, HP)
                    msg_ref[pl.ds(nidx, 1), :] = msg_ref[pl.ds(nidx, 1), :] + row

        # ---- attention (softmax over length-1 groups == 1) + update MLP -------
        msg = msg_ref[...]
        ns = ns_ref[...]
        attn = mm(msg, wv_ref[...])                           # (NP, HP)
        hid = jnp.maximum(mm(attn, u1_ref[0:HP, :])           # rows of U1 hit by attn
                          + mm(ns, u1_ref[HP:2 * HP, :])      # rows of U1 hit by ns
                          + ub1_ref[...], 0.0)                # (NP, UH); concat-free
        y = mm(hid, u2_ref[...]) + ub2_ref[...]               # (NP, HP)
        o_ref[...] = y.astype(o_ref.dtype)

    return kernel


# --------------------------- weight padding helpers ---------------------------

def _pad_weight_blocks(w, h, hp, a_in, a_out):
    """(a_in*h, a_out*h) -> (a_in*hp, a_out*hp), each (h,h) block at 128-aligned offsets."""
    out = jnp.zeros((a_in * hp, a_out * hp), jnp.float32)
    for i in range(a_in):
        for j in range(a_out):
            out = out.at[i * hp:i * hp + h, j * hp:j * hp + h].set(
                w[i * h:(i + 1) * h, j * h:(j + 1) * h])
    return out


def _pad_bias_blocks(b, h, hp, a_out):
    out = jnp.zeros((1, a_out * hp), jnp.float32)
    for j in range(a_out):
        out = out.at[:, j * hp:j * hp + h].set(b[:, j * h:(j + 1) * h])
    return out


# --------------------------- parameters / forward ---------------------------

def init_params(key, relations, hidden_size):
    def nxt():
        nonlocal key
        key, sub = jax.random.split(key)
        return sub

    params = {"relations": {}, "hidden_size": hidden_size}
    for rel, arity in relations:
        d = arity * hidden_size
        if d > 0:
            params["relations"][rel] = dict(
                arity=arity,
                w1=0.1 * jax.random.normal(nxt(), (d, d), jnp.float32),
                b1=0.1 * jax.random.normal(nxt(), (1, d), jnp.float32),
                w2=0.1 * jax.random.normal(nxt(), (d, d), jnp.float32),
                b2=0.1 * jax.random.normal(nxt(), (1, d), jnp.float32),
            )
        else:
            params["relations"][rel] = None  # arity 0 -> module is None
    h = hidden_size
    # wq / wk mirror the module (used by the reference); the fused kernel does not
    # need them: softmax over one message is identically 1.
    params["wq"] = 0.1 * jax.random.normal(nxt(), (h, h), jnp.float32)
    params["wk"] = 0.1 * jax.random.normal(nxt(), (h, h), jnp.float32)
    params["wv"] = 0.1 * jax.random.normal(nxt(), (h, h), jnp.float32)
    params["u1"] = 0.1 * jax.random.normal(nxt(), (2 * h, 2 * h), jnp.float32)
    params["ub1"] = 0.1 * jax.random.normal(nxt(), (1, 2 * h), jnp.float32)
    params["u2"] = 0.1 * jax.random.normal(nxt(), (2 * h, h), jnp.float32)
    params["ub2"] = 0.1 * jax.random.normal(nxt(), (1, h), jnp.float32)
    return params


def _check_one_message_per_node(params, relation_values, num_nodes):
    """Value-level guard of the module invariant (concrete indices only)."""
    idx_arrays = []
    try:
        for rel, p in params["relations"].items():
            if p is None or rel not in relation_values:
                continue
            idx_arrays.append(np.asarray(relation_values[rel]))
    except Exception:
        # Traced indices (under jit): the caller's static count check still holds;
        # per-node uniqueness is assumed (it is forced by the torch reference).
        return
    counts = np.zeros(num_nodes, np.int64)
    for idx in idx_arrays:
        assert idx.size == 0 or (idx.min() >= 0 and idx.max() < num_nodes), \
            "node index out of range"
        np.add.at(counts, idx, 1)
    assert (counts == 1).all(), (
        "RelationMessagePassing requires exactly one message per node "
        "(the torch reference would otherwise fail / mis-slice).")


def relation_message_passing_forward(params, node_states, relation_values, *,
                                     mxu_dtype=jnp.float32):
    """Fully fused Pallas forward.

    node_states: (N, H) f32.  relation_values: dict relation_id -> flat int32
    node indices (length = num_tuples * arity).
    mxu_dtype: set to jnp.bfloat16 on v6e/v7x for ~2x MXU throughput (elementwise
    work stays f32); default f32 for exact parity with the f32 reference.
    """
    H = params["hidden_size"]
    N = node_states.shape[0]
    HP = _round_up(H, 128)       # lane-dense hidden axis
    NP = _round_up(N, 8)         # sublane-aligned row count
    UH = _round_up(2 * H, 128)   # padded update-MLP hidden width

    # -- static structural checks (valid even under tracing / jit) --
    active = []
    total_msgs = 0
    for rel in sorted(params["relations"].keys()):
        p = params["relations"][rel]
        if p is None or rel not in relation_values:
            continue
        a = p["arity"]
        vals = jnp.asarray(relation_values[rel], jnp.int32)
        assert vals.ndim == 1 and vals.shape[0] % a == 0, (
            f"relation {rel}: flat index length {vals.shape[0]} is not a multiple of arity {a}")
        total_msgs += vals.shape[0]
        active.append((rel, p, vals))
    assert total_msgs == N, (
        "RelationMessagePassing requires exactly one message per node "
        f"(got {total_msgs} messages for {N} nodes).")
    _check_one_message_per_node(params, relation_values, N)

    # -- build static plan, SMEM index args, and block-padded VMEM weight args --
    plan, idx_args, weight_args = [], [], []
    for rel, p, vals in active:
        a = p["arity"]
        T = vals.shape[0] // a
        plan.append((a, T))
        idx_args.append(vals)
        weight_args += [
            _pad_weight_blocks(p["w1"], H, HP, a, a),
            _pad_bias_blocks(p["b1"], H, HP, a),
            _pad_weight_blocks(p["w2"], H, HP, a, a),
            _pad_bias_blocks(p["b2"], H, HP, a),
        ]

    # TODO(synk): pad parameters once at init time instead of per forward call.
    ns_pad = jnp.pad(node_states.astype(jnp.float32), ((0, NP - N), (0, HP - H)))
    wv_p = jnp.zeros((HP, HP), jnp.float32).at[:H, :H].set(params["wv"])
    u1_p = (jnp.zeros((2 * HP, UH), jnp.float32)
            .at[:H, :2 * H].set(params["u1"][:H])            # rows multiplying attn
            .at[HP:HP + H, :2 * H].set(params["u1"][H:]))     # rows multiplying node states
    ub1_p = jnp.zeros((1, UH), jnp.float32).at[:, :2 * H].set(params["ub1"])
    u2_p = jnp.zeros((UH, HP), jnp.float32).at[:2 * H, :H].set(params["u2"])
    ub2_p = jnp.zeros((1, HP), jnp.float32).at[:, :H].set(params["ub2"])

    vmem_ops = [ns_pad] + weight_args + [wv_p, u1_p, ub1_p, u2_p, ub2_p]

    grid_spec = pltpu.PrefetchScalarGridSpec(
        num_scalar_prefetch=len(idx_args),
        grid=(1,),   # single fused launch; everything fits VMEM at these sizes
        in_specs=[pl.BlockSpec(op.shape, lambda i, *_: (0, 0)) for op in vmem_ops],
        out_specs=pl.BlockSpec((NP, HP), lambda i, *_: (0, 0)),
        scratch_shapes=[pltpu.VMEM((NP, HP), jnp.float32)] +
                       [pltpu.VMEM((T, a * HP), jnp.float32) for a, T in plan],
    )

    out_pad = pl.pallas_call(
        _make_fused_kernel(plan, HP, UH, mxu_dtype),
        out_shape=jax.ShapeDtypeStruct((NP, HP), node_states.dtype),
        grid_spec=grid_spec,
        compiler_params=pltpu.CompilerParams(dimension_semantics=("arbitrary",)),
    )(*idx_args, *vmem_ops)

    return out_pad[:N, :H]


# ---------------------- pure-JAX reference (PyTorch-mirroring) ----------------------

def reference_forward(params, node_states, relation_values):
    H = params["hidden_size"]
    N = node_states.shape[0]
    msg_list = [[] for _ in range(N)]
    for rel in params["relations"]:
        p = params["relations"][rel]
        if p is None or rel not in relation_values:
            continue
        values = relation_values[rel]
        inp = node_states[values].reshape(-1, p["arity"] * H)
        h = jnp.maximum(inp @ p["w1"] + p["b1"], 0.0)
        out = (h @ p["w2"] + p["b2"]).reshape(-1, H)
        for idx in range(out.shape[0]):
            msg_list[int(values[idx])].append(out[idx])
    lengths = [len(m) for m in msg_list]
    starts = [sum(lengths[:i]) for i in range(N)]
    ends = [starts[i] + lengths[i] for i in range(N)]
    messages = jnp.concatenate([jnp.stack(m) for m in msg_list])
    queries = node_states @ params["wq"]
    keys = messages @ params["wk"]
    vals = messages @ params["wv"]
    blocks = []
    for i in range(N):
        q = queries[starts[i]:ends[i]]
        k = keys[starts[i]:ends[i]]
        v = vals[starts[i]:ends[i]]
        blocks.append(jax.nn.softmax((q @ k.T) / (lengths[i] ** 0.5), axis=0) @ v)
    attentions = jnp.concatenate(blocks)
    x = jnp.concatenate([attentions, node_states], axis=1)
    h = jnp.maximum(x @ params["u1"] + params["ub1"], 0.0)
    return h @ params["u2"] + params["ub2"]


# ------------------------------------ main ------------------------------------

if __name__ == "__main__":
    key = jax.random.PRNGKey(0)
    hidden_size = 32
    num_nodes = 16
    # relation list mirrors the module __init__: (relation_id, arity); arity 0 -> None module
    relations_def = [(0, 1), (1, 2), (2, 0)]

    pkey, xkey = jax.random.split(key)
    params = init_params(pkey, relations_def, hidden_size)
    node_states = jax.random.normal(xkey, (num_nodes, hidden_size), jnp.float32)

    # flattened per-relation node indices; together they touch every node exactly once
    relation_values = {
        0: jnp.array([0, 3, 5, 6, 9, 10, 12, 15], dtype=jnp.int32),   # arity-1 tuples
        1: jnp.array([1, 2, 4, 7, 8, 11, 13, 14], dtype=jnp.int32),   # tuples (1,2),(4,7),(8,11),(13,14)
    }

    out = relation_message_passing_forward(params, node_states, relation_values)
    out = jax.block_until_ready(out)
    assert out.shape == (num_nodes, hidden_size)

    ref = reference_forward(params, node_states, relation_values)
    np.testing.assert_allclose(np.asarray(out), np.asarray(ref), rtol=1e-4, atol=1e-4)

    print("KERNEL_OK")
</pallas_src>

<mosaic_0001>
module attributes {stable_mosaic.version = 11 : i64} {
  func.func @kernel(%arg0: i32, %arg1: memref<8xi32, #tpu.memory_space<smem>>, %arg2: memref<8xi32, #tpu.memory_space<smem>>, %arg3: memref<16x128xf32, #tpu.memory_space<vmem>>, %arg4: memref<128x128xf32, #tpu.memory_space<vmem>>, %arg5: memref<1x128xf32, #tpu.memory_space<vmem>>, %arg6: memref<128x128xf32, #tpu.memory_space<vmem>>, %arg7: memref<1x128xf32, #tpu.memory_space<vmem>>, %arg8: memref<256x256xf32, #tpu.memory_space<vmem>>, %arg9: memref<1x256xf32, #tpu.memory_space<vmem>>, %arg10: memref<256x256xf32, #tpu.memory_space<vmem>>, %arg11: memref<1x256xf32, #tpu.memory_space<vmem>>, %arg12: memref<128x128xf32, #tpu.memory_space<vmem>>, %arg13: memref<256x128xf32, #tpu.memory_space<vmem>>, %arg14: memref<1x128xf32, #tpu.memory_space<vmem>>, %arg15: memref<128x128xf32, #tpu.memory_space<vmem>>, %arg16: memref<1x128xf32, #tpu.memory_space<vmem>>, %arg17: memref<16x128xf32, #tpu.memory_space<vmem>>, %arg18: memref<16x128xf32, #tpu.memory_space<vmem>>, %arg19: memref<8x128xf32, #tpu.memory_space<vmem>>, %arg20: memref<4x256xf32, #tpu.memory_space<vmem>>) attributes {dimension_semantics = [#tpu.dimension_semantics<arbitrary>], iteration_bounds = array<i64: 1>, scalar_prefetch = 2 : i64, scratch_operands = 3 : i64, tpu.core_type = #tpu.core_type<tc>, window_params = [{pipeline_mode = #tpu.pipeline_mode<synchronous>, transform_indices = @transform_0, window_bounds = array<i64: 16, 128>}, {pipeline_mode = #tpu.pipeline_mode<synchronous>, transform_indices = @transform_1, window_bounds = array<i64: 128, 128>}, {pipeline_mode = #tpu.pipeline_mode<synchronous>, transform_indices = @transform_2, window_bounds = array<i64: 1, 128>}, {pipeline_mode = #tpu.pipeline_mode<synchronous>, transform_indices = @transform_3, window_bounds = array<i64: 128, 128>}, {pipeline_mode = #tpu.pipeline_mode<synchronous>, transform_indices = @transform_4, window_bounds = array<i64: 1, 128>}, {pipeline_mode = #tpu.pipeline_mode<synchronous>, transform_indices = @transform_5, window_bounds = array<i64: 256, 256>}, {pipeline_mode = #tpu.pipeline_mode<synchronous>, transform_indices = @transform_6, window_bounds = array<i64: 1, 256>}, {pipeline_mode = #tpu.pipeline_mode<synchronous>, transform_indices = @transform_7, window_bounds = array<i64: 256, 256>}, {pipeline_mode = #tpu.pipeline_mode<synchronous>, transform_indices = @transform_8, window_bounds = array<i64: 1, 256>}, {pipeline_mode = #tpu.pipeline_mode<synchronous>, transform_indices = @transform_9, window_bounds = array<i64: 128, 128>}, {pipeline_mode = #tpu.pipeline_mode<synchronous>, transform_indices = @transform_10, window_bounds = array<i64: 256, 128>}, {pipeline_mode = #tpu.pipeline_mode<synchronous>, transform_indices = @transform_11, window_bounds = array<i64: 1, 128>}, {pipeline_mode = #tpu.pipeline_mode<synchronous>, transform_indices = @transform_12, window_bounds = array<i64: 128, 128>}, {pipeline_mode = #tpu.pipeline_mode<synchronous>, transform_indices = @transform_13, window_bounds = array<i64: 1, 128>}, {pipeline_mode = #tpu.pipeline_mode<synchronous>, transform_indices = @transform_14, window_bounds = array<i64: 16, 128>}]} {
    %cst = arith.constant 0.000000e+00 : f32
    %0 = vector.broadcast %cst : f32 to vector<16x128xf32>
    %c0 = arith.constant 0 : index
    %c0_0 = arith.constant 0 : index
    %1 = vector.load %arg18[%c0, %c0_0] : memref<16x128xf32, #tpu.memory_space<vmem>>, vector<16x128xf32>
    tpu.vector_store %arg18[%c0, %c0_0], %0 {strides = array<i32>} : memref<16x128xf32, #tpu.memory_space<vmem>>, vector<16x128xf32>,
    %c0_1 = arith.constant 0 : index
    %2 = memref.load %arg1[%c0_1] : memref<8xi32, #tpu.memory_space<smem>>
    %3 = arith.index_cast %2 : i32 to index
    %c0_2 = arith.constant 0 : index
    %4 = vector.load %arg3[%3, %c0_2] : memref<16x128xf32, #tpu.memory_space<vmem>>, vector<1x128xf32>
    %c0_3 = arith.constant 0 : index
    %c0_4 = arith.constant 0 : index
    %5 = vector.load %arg19[%c0_3, %c0_4] : memref<8x128xf32, #tpu.memory_space<vmem>>, vector<1x128xf32>
    tpu.vector_store %arg19[%c0_3, %c0_4], %4 {strides = array<i32>} : memref<8x128xf32, #tpu.memory_space<vmem>>, vector<1x128xf32>,
    %c1 = arith.constant 1 : index
    %6 = memref.load %arg1[%c1] : memref<8xi32, #tpu.memory_space<smem>>
    %7 = arith.index_cast %6 : i32 to index
    %c0_5 = arith.constant 0 : index
    %8 = vector.load %arg3[%7, %c0_5] : memref<16x128xf32, #tpu.memory_space<vmem>>, vector<1x128xf32>
    %c1_6 = arith.constant 1 : index
    %c0_7 = arith.constant 0 : index
    %9 = vector.load %arg19[%c1_6, %c0_7] : memref<8x128xf32, #tpu.memory_space<vmem>>, vector<1x128xf32>
    tpu.vector_store %arg19[%c1_6, %c0_7], %8 {strides = array<i32>} : memref<8x128xf32, #tpu.memory_space<vmem>>, vector<1x128xf32>,
    %c2 = arith.constant 2 : index
    %10 = memref.load %arg1[%c2] : memref<8xi32, #tpu.memory_space<smem>>
    %11 = arith.index_cast %10 : i32 to index
    %c0_8 = arith.constant 0 : index
    %12 = vector.load %arg3[%11, %c0_8] : memref<16x128xf32, #tpu.memory_space<vmem>>, vector<1x128xf32>
    %c2_9 = arith.constant 2 : index
    %c0_10 = arith.constant 0 : index
    %13 = vector.load %arg19[%c2_9, %c0_10] : memref<8x128xf32, #tpu.memory_space<vmem>>, vector<1x128xf32>
    tpu.vector_store %arg19[%c2_9, %c0_10], %12 {strides = array<i32>} : memref<8x128xf32, #tpu.memory_space<vmem>>, vector<1x128xf32>,
    %c3 = arith.constant 3 : index
    %14 = memref.load %arg1[%c3] : memref<8xi32, #tpu.memory_space<smem>>
    %15 = arith.index_cast %14 : i32 to index
    %c0_11 = arith.constant 0 : index
    %16 = vector.load %arg3[%15, %c0_11] : memref<16x128xf32, #tpu.memory_space<vmem>>, vector<1x128xf32>
    %c3_12 = arith.constant 3 : index
    %c0_13 = arith.constant 0 : index
    %17 = vector.load %arg19[%c3_12, %c0_13] : memref<8x128xf32, #tpu.memory_space<vmem>>, vector<1x128xf32>
    tpu.vector_store %arg19[%c3_12, %c0_13], %16 {strides = array<i32>} : memref<8x128xf32, #tpu.memory_space<vmem>>, vector<1x128xf32>,
    %c4 = arith.constant 4 : index
    %18 = memref.load %arg1[%c4] : memref<8xi32, #tpu.memory_space<smem>>
    %19 = arith.index_cast %18 : i32 to index
    %c0_14 = arith.constant 0 : index
    %20 = vector.load %arg3[%19, %c0_14] : memref<16x128xf32, #tpu.memory_space<vmem>>, vector<1x128xf32>
    %c4_15 = arith.constant 4 : index
    %c0_16 = arith.constant 0 : index
    %21 = vector.load %arg19[%c4_15, %c0_16] : memref<8x128xf32, #tpu.memory_space<vmem>>, vector<1x128xf32>
    tpu.vector_store %arg19[%c4_15, %c0_16], %20 {strides = array<i32>} : memref<8x128xf32, #tpu.memory_space<vmem>>, vector<1x128xf32>,
    %c5 = arith.constant 5 : index
    %22 = memref.load %arg1[%c5] : memref<8xi32, #tpu.memory_space<smem>>
    %23 = arith.index_cast %22 : i32 to index
    %c0_17 = arith.constant 0 : index
    %24 = vector.load %arg3[%23, %c0_17] : memref<16x128xf32, #tpu.memory_space<vmem>>, vector<1x128xf32>
    %c5_18 = arith.constant 5 : index
    %c0_19 = arith.constant 0 : index
    %25 = vector.load %arg19[%c5_18, %c0_19] : memref<8x128xf32, #tpu.memory_space<vmem>>, vector<1x128xf32>
    tpu.vector_store %arg19[%c5_18, %c0_19], %24 {strides = array<i32>} : memref<8x128xf32, #tpu.memory_space<vmem>>, vector<1x128xf32>,
    %c6 = arith.constant 6 : index
    %26 = memref.load %arg1[%c6] : memref<8xi32, #tpu.memory_space<smem>>
    %27 = arith.index_cast %26 : i32 to index
    %c0_20 = arith.constant 0 : index
    %28 = vector.load %arg3[%27, %c0_20] : memref<16x128xf32, #tpu.memory_space<vmem>>, vector<1x128xf32>
    %c6_21 = arith.constant 6 : index
    %c0_22 = arith.constant 0 : index
    %29 = vector.load %arg19[%c6_21, %c0_22] : memref<8x128xf32, #tpu.memory_space<vmem>>, vector<1x128xf32>
    tpu.vector_store %arg19[%c6_21, %c0_22], %28 {strides = array<i32>} : memref<8x128xf32, #tpu.memory_space<vmem>>, vector<1x128xf32>,
    %c7 = arith.constant 7 : index
    %30 = memref.load %arg1[%c7] : memref<8xi32, #tpu.memory_space<smem>>
    %31 = arith.index_cast %30 : i32 to index
    %c0_23 = arith.constant 0 : index
    %32 = vector.load %arg3[%31, %c0_23] : memref<16x128xf32, #tpu.memory_space<vmem>>, vector<1x128xf32>
    %c7_24 = arith.constant 7 : index
    %c0_25 = arith.constant 0 : index
    %33 = vector.load %arg19[%c7_24, %c0_25] : memref<8x128xf32, #tpu.memory_space<vmem>>, vector<1x128xf32>
    tpu.vector_store %arg19[%c7_24, %c0_25], %32 {strides = array<i32>} : memref<8x128xf32, #tpu.memory_space<vmem>>, vector<1x128xf32>,
    %c0_26 = arith.constant 0 : index
    %c0_27 = arith.constant 0 : index
    %34 = vector.load %arg19[%c0_26, %c0_27] : memref<8x128xf32, #tpu.memory_space<vmem>>, vector<8x128xf32>
    %c0_28 = arith.constant 0 : index
    %c0_29 = arith.constant 0 : index
    %35 = vector.load %arg4[%c0_28, %c0_29] : memref<128x128xf32, #tpu.memory_space<vmem>>, vector<128x128xf32>
    %cst_30 = arith.constant dense<0.000000e+00> : vector<8x128xf32>
    %36 = tpu.matmul %34, %35, %cst_30 {dimension_numbers = #tpu.dot_dimension_numbers<[1], [0], [0], [1], [0, 0, 1, 1], [], []>} : vector<8x128xf32>, vector<128x128xf32>, vector<8x128xf32> -> vector<8x128xf32>
    %c0_31 = arith.constant 0 : index
    %c0_32 = arith.constant 0 : index
    %37 = vector.load %arg5[%c0_31, %c0_32] : memref<1x128xf32, #tpu.memory_space<vmem>>, vector<1x128xf32>
    %38 = vector.broadcast %37 : vector<1x128xf32> to vector<8x128xf32>
    %39 = arith.addf %36, %38 : vector<8x128xf32>
    %cst_33 = arith.constant 0.000000e+00 : f32
    %40 = vector.broadcast %cst_33 : f32 to vector<8x128xf32>
    %41 = arith.maximumf %39, %40 : vector<8x128xf32>
    %c0_34 = arith.constant 0 : index
    %c0_35 = arith.constant 0 : index
    %42 = vector.load %arg6[%c0_34, %c0_35] : memref<128x128xf32, #tpu.memory_space<vmem>>, vector<128x128xf32>
    %cst_36 = arith.constant dense<0.000000e+00> : vector<8x128xf32>
    %43 = tpu.matmul %41, %42, %cst_36 {dimension_numbers = #tpu.dot_dimension_numbers<[1], [0], [0], [1], [0, 0, 1, 1], [], []>} : vector<8x128xf32>, vector<128x128xf32>, vector<8x128xf32> -> vector<8x128xf32>
    %c0_37 = arith.constant 0 : index
    %c0_38 = arith.constant 0 : index
    %44 = vector.load %arg7[%c0_37, %c0_38] : memref<1x128xf32, #tpu.memory_space<vmem>>, vector<1x128xf32>
    %45 = vector.broadcast %44 : vector<1x128xf32> to vector<8x128xf32>
    %46 = arith.addf %43, %45 : vector<8x128xf32>
    %c0_39 = arith.constant 0 : index
    %47 = memref.load %arg1[%c0_39] : memref<8xi32, #tpu.memory_space<smem>>
    %48 = vector.extract_strided_slice %46 {offsets = [0, 0], sizes = [1, 128], strides = [1, 1]} : vector<8x128xf32> to vector<1x128xf32>
    %49 = arith.index_cast %47 : i32 to index
    %c0_40 = arith.constant 0 : index
    %50 = vector.load %arg18[%49, %c0_40] : memref<16x128xf32, #tpu.memory_space<vmem>>, vector<1x128xf32>
    %51 = arith.addf %50, %48 : vector<1x128xf32>
    %52 = arith.index_cast %47 : i32 to index
    %c0_41 = arith.constant 0 : index
    %53 = vector.load %arg18[%52, %c0_41] : memref<16x128xf32, #tpu.memory_space<vmem>>, vector<1x128xf32>
    tpu.vector_store %arg18[%52, %c0_41], %51 {strides = array<i32>} : memref<16x128xf32, #tpu.memory_space<vmem>>, vector<1x128xf32>,
    %c1_42 = arith.constant 1 : index
    %54 = memref.load %arg1[%c1_42] : memref<8xi32, #tpu.memory_space<smem>>
    %55 = vector.extract_strided_slice %46 {offsets = [1, 0], sizes = [1, 128], strides = [1, 1]} : vector<8x128xf32> to vector<1x128xf32>
    %56 = arith.index_cast %54 : i32 to index
    %c0_43 = arith.constant 0 : index
    %57 = vector.load %arg18[%56, %c0_43] : memref<16x128xf32, #tpu.memory_space<vmem>>, vector<1x128xf32>
    %58 = arith.addf %57, %55 : vector<1x128xf32>
    %59 = arith.index_cast %54 : i32 to index
    %c0_44 = arith.constant 0 : index
    %60 = vector.load %arg18[%59, %c0_44] : memref<16x128xf32, #tpu.memory_space<vmem>>, vector<1x128xf32>
    tpu.vector_store %arg18[%59, %c0_44], %58 {strides = array<i32>} : memref<16x128xf32, #tpu.memory_space<vmem>>, vector<1x128xf32>,
    %c2_45 = arith.constant 2 : index
    %61 = memref.load %arg1[%c2_45] : memref<8xi32, #tpu.memory_space<smem>>
    %62 = vector.extract_strided_slice %46 {offsets = [2, 0], sizes = [1, 128], strides = [1, 1]} : vector<8x128xf32> to vector<1x128xf32>
    %63 = arith.index_cast %61 : i32 to index
    %c0_46 = arith.constant 0 : index
    %64 = vector.load %arg18[%63, %c0_46] : memref<16x128xf32, #tpu.memory_space<vmem>>, vector<1x128xf32>
    %65 = arith.addf %64, %62 : vector<1x128xf32>
    %66 = arith.index_cast %61 : i32 to index
    %c0_47 = arith.constant 0 : index
    %67 = vector.load %arg18[%66, %c0_47] : memref<16x128xf32, #tpu.memory_space<vmem>>, vector<1x128xf32>
    tpu.vector_store %arg18[%66, %c0_47], %65 {strides = array<i32>} : memref<16x128xf32, #tpu.memory_space<vmem>>, vector<1x128xf32>,
    %c3_48 = arith.constant 3 : index
    %68 = memref.load %arg1[%c3_48] : memref<8xi32, #tpu.memory_space<smem>>
    %69 = vector.extract_strided_slice %46 {offsets = [3, 0], sizes = [1, 128], strides = [1, 1]} : vector<8x128xf32> to vector<1x128xf32>
    %70 = arith.index_cast %68 : i32 to index
    %c0_49 = arith.constant 0 : index
    %71 = vector.load %arg18[%70, %c0_49] : memref<16x128xf32, #tpu.memory_space<vmem>>, vector<1x128xf32>
    %72 = arith.addf %71, %69 : vector<1x128xf32>
    %73 = arith.index_cast %68 : i32 to index
    %c0_50 = arith.constant 0 : index
    %74 = vector.load %arg18[%73, %c0_50] : memref<16x128xf32, #tpu.memory_space<vmem>>, vector<1x128xf32>
    tpu.vector_store %arg18[%73, %c0_50], %72 {strides = array<i32>} : memref<16x128xf32, #tpu.memory_space<vmem>>, vector<1x128xf32>,
    %c4_51 = arith.constant 4 : index
    %75 = memref.load %arg1[%c4_51] : memref<8xi32, #tpu.memory_space<smem>>
    %76 = vector.extract_strided_slice %46 {offsets = [4, 0], sizes = [1, 128], strides = [1, 1]} : vector<8x128xf32> to vector<1x128xf32>
    %77 = arith.index_cast %75 : i32 to index
    %c0_52 = arith.constant 0 : index
    %78 = vector.load %arg18[%77, %c0_52] : memref<16x128xf32, #tpu.memory_space<vmem>>, vector<1x128xf32>
    %79 = arith.addf %78, %76 : vector<1x128xf32>
    %80 = arith.index_cast %75 : i32 to index
    %c0_53 = arith.constant 0 : index
    %81 = vector.load %arg18[%80, %c0_53] : memref<16x128xf32, #tpu.memory_space<vmem>>, vector<1x128xf32>
    tpu.vector_store %arg18[%80, %c0_53], %79 {strides = array<i32>} : memref<16x128xf32, #tpu.memory_space<vmem>>, vector<1x128xf32>,
    %c5_54 = arith.constant 5 : index
    %82 = memref.load %arg1[%c5_54] : memref<8xi32, #tpu.memory_space<smem>>
    %83 = vector.extract_strided_slice %46 {offsets = [5, 0], sizes = [1, 128], strides = [1, 1]} : vector<8x128xf32> to vector<1x128xf32>
    %84 = arith.index_cast %82 : i32 to index
    %c0_55 = arith.constant 0 : index
    %85 = vector.load %arg18[%84, %c0_55] : memref<16x128xf32, #tpu.memory_space<vmem>>, vector<1x128xf32>
    %86 = arith.addf %85, %83 : vector<1x128xf32>
    %87 = arith.index_cast %82 : i32 to index
    %c0_56 = arith.constant 0 : index
    %88 = vector.load %arg18[%87, %c0_56] : memref<16x128xf32, #tpu.memory_space<vmem>>, vector<1x128xf32>
    tpu.vector_store %arg18[%87, %c0_56], %86 {strides = array<i32>} : memref<16x128xf32, #tpu.memory_space<vmem>>, vector<1x128xf32>,
    %c6_57 = arith.constant 6 : index
    %89 = memref.load %arg1[%c6_57] : memref<8xi32, #tpu.memory_space<smem>>
    %90 = vector.extract_strided_slice %46 {offsets = [6, 0], sizes = [1, 128], strides = [1, 1]} : vector<8x128xf32> to vector<1x128xf32>
    %91 = arith.index_cast %89 : i32 to index
    %c0_58 = arith.constant 0 : index
    %92 = vector.load %arg18[%91, %c0_58] : memref<16x128xf32, #tpu.memory_space<vmem>>, vector<1x128xf32>
    %93 = arith.addf %92, %90 : vector<1x128xf32>
    %94 = arith.index_cast %89 : i32 to index
    %c0_59 = arith.constant 0 : index
    %95 = vector.load %arg18[%94, %c0_59] : memref<16x128xf32, #tpu.memory_space<vmem>>, vector<1x128xf32>
    tpu.vector_store %arg18[%94, %c0_59], %93 {strides = array<i32>} : memref<16x128xf32, #tpu.memory_space<vmem>>, vector<1x128xf32>,
    %c7_60 = arith.constant 7 : index
    %96 = memref.load %arg1[%c7_60] : memref<8xi32, #tpu.memory_space<smem>>
    %97 = vector.extract_strided_slice %46 {offsets = [7, 0], sizes = [1, 128], strides = [1, 1]} : vector<8x128xf32> to vector<1x128xf32>
    %98 = arith.index_cast %96 : i32 to index
    %c0_61 = arith.constant 0 : index
    %99 = vector.load %arg18[%98, %c0_61] : memref<16x128xf32, #tpu.memory_space<vmem>>, vector<1x128xf32>
    %100 = arith.addf %99, %97 : vector<1x128xf32>
    %101 = arith.index_cast %96 : i32 to index
    %c0_62 = arith.constant 0 : index
    %102 = vector.load %arg18[%101, %c0_62] : memref<16x128xf32, #tpu.memory_space<vmem>>, vector<1x128xf32>
    tpu.vector_store %arg18[%101, %c0_62], %100 {strides = array<i32>} : memref<16x128xf32, #tpu.memory_space<vmem>>, vector<1x128xf32>,
    %c0_63 = arith.constant 0 : index
    %103 = memref.load %arg2[%c0_63] : memref<8xi32, #tpu.memory_space<smem>>
    %104 = arith.index_cast %103 : i32 to index
    %c0_64 = arith.constant 0 : index
    %105 = vector.load %arg3[%104, %c0_64] : memref<16x128xf32, #tpu.memory_space<vmem>>, vector<1x128xf32>
    %c0_65 = arith.constant 0 : index
    %c0_66 = arith.constant 0 : index
    %106 = vector.load %arg20[%c0_65, %c0_66] : memref<4x256xf32, #tpu.memory_space<vmem>>, vector<1x128xf32>
    tpu.vector_store %arg20[%c0_65, %c0_66], %105 {strides = array<i32>} : memref<4x256xf32, #tpu.memory_space<vmem>>, vector<1x128xf32>,
    %c1_67 = arith.constant 1 : index
    %107 = memref.load %arg2[%c1_67] : memref<8xi32, #tpu.memory_space<smem>>
    %108 = arith.index_cast %107 : i32 to index
    %c0_68 = arith.constant 0 : index
    %109 = vector.load %arg3[%108, %c0_68] : memref<16x128xf32, #tpu.memory_space<vmem>>, vector<1x128xf32>
    %c0_69 = arith.constant 0 : index
    %c128 = arith.constant 128 : index
    %110 = vector.load %arg20[%c0_69, %c128] : memref<4x256xf32, #tpu.memory_space<vmem>>, vector<1x128xf32>
    tpu.vector_store %arg20[%c0_69, %c128], %109 {strides = array<i32>} : memref<4x256xf32, #tpu.memory_space<vmem>>, vector<1x128xf32>,
    %c2_70 = arith.constant 2 : index
    %111 = memref.load %arg2[%c2_70] : memref<8xi32, #tpu.memory_space<smem>>
    %112 = arith.index_cast %111 : i32 to index
    %c0_71 = arith.constant 0 : index
    %113 = vector.load %arg3[%112, %c0_71] : memref<16x128xf32, #tpu.memory_space<vmem>>, vector<1x128xf32>
    %c1_72 = arith.constant 1 : index
    %c0_73 = arith.constant 0 : index
    %114 = vector.load %arg20[%c1_72, %c0_73] : memref<4x256xf32, #tpu.memory_space<vmem>>, vector<1x128xf32>
    tpu.vector_store %arg20[%c1_72, %c0_73], %113 {strides = array<i32>} : memref<4x256xf32, #tpu.memory_space<vmem>>, vector<1x128xf32>,
    %c3_74 = arith.constant 3 : index
    %115 = memref.load %arg2[%c3_74] : memref<8xi32, #tpu.memory_space<smem>>
    %116 = arith.index_cast %115 : i32 to index
    %c0_75 = arith.constant 0 : index
    %117 = vector.load %arg3[%116, %c0_75] : memref<16x128xf32, #tpu.memory_space<vmem>>, vector<1x128xf32>
    %c1_76 = arith.constant 1 : index
    %c128_77 = arith.constant 128 : index
    %118 = vector.load %arg20[%c1_76, %c128_77] : memref<4x256xf32, #tpu.memory_space<vmem>>, vector<1x128xf32>
    tpu.vector_store %arg20[%c1_76, %c128_77], %117 {strides = array<i32>} : memref<4x256xf32, #tpu.memory_space<vmem>>, vector<1x128xf32>,
    %c4_78 = arith.constant 4 : index
    %119 = memref.load %arg2[%c4_78] : memref<8xi32, #tpu.memory_space<smem>>
    %120 = arith.index_cast %119 : i32 to index
    %c0_79 = arith.constant 0 : index
    %121 = vector.load %arg3[%120, %c0_79] : memref<16x128xf32, #tpu.memory_space<vmem>>, vector<1x128xf32>
    %c2_80 = arith.constant 2 : index
    %c0_81 = arith.constant 0 : index
    %122 = vector.load %arg20[%c2_80, %c0_81] : memref<4x256xf32, #tpu.memory_space<vmem>>, vector<1x128xf32>
    tpu.vector_store %arg20[%c2_80, %c0_81], %121 {strides = array<i32>} : memref<4x256xf32, #tpu.memory_space<vmem>>, vector<1x128xf32>,
    %c5_82 = arith.constant 5 : index
    %123 = memref.load %arg2[%c5_82] : memref<8xi32, #tpu.memory_space<smem>>
    %124 = arith.index_cast %123 : i32 to index
    %c0_83 = arith.constant 0 : index
    %125 = vector.load %arg3[%124, %c0_83] : memref<16x128xf32, #tpu.memory_space<vmem>>, vector<1x128xf32>
    %c2_84 = arith.constant 2 : index
    %c128_85 = arith.constant 128 : index
    %126 = vector.load %arg20[%c2_84, %c128_85] : memref<4x256xf32, #tpu.memory_space<vmem>>, vector<1x128xf32>
    tpu.vector_store %arg20[%c2_84, %c128_85], %125 {strides = array<i32>} : memref<4x256xf32, #tpu.memory_space<vmem>>, vector<1x128xf32>,
    %c6_86 = arith.constant 6 : index
    %127 = memref.load %arg2[%c6_86] : memref<8xi32, #tpu.memory_space<smem>>
    %128 = arith.index_cast %127 : i32 to index
    %c0_87 = arith.constant 0 : index
    %129 = vector.load %arg3[%128, %c0_87] : memref<16x128xf32, #tpu.memory_space<vmem>>, vector<1x128xf32>
    %c3_88 = arith.constant 3 : index
    %c0_89 = arith.constant 0 : index
    %130 = vector.load %arg20[%c3_88, %c0_89] : memref<4x256xf32, #tpu.memory_space<vmem>>, vector<1x128xf32>
    tpu.vector_store %arg20[%c3_88, %c0_89], %129 {strides = array<i32>} : memref<4x256xf32, #tpu.memory_space<vmem>>, vector<1x128xf32>,
    %c7_90 = arith.constant 7 : index
    %131 = memref.load %arg2[%c7_90] : memref<8xi32, #tpu.memory_space<smem>>
    %132 = arith.index_cast %131 : i32 to index
    %c0_91 = arith.constant 0 : index
    %133 = vector.load %arg3[%132, %c0_91] : memref<16x128xf32, #tpu.memory_space<vmem>>, vector<1x128xf32>
    %c3_92 = arith.constant 3 : index
    %c128_93 = arith.constant 128 : index
    %134 = vector.load %arg20[%c3_92, %c128_93] : memref<4x256xf32, #tpu.memory_space<vmem>>, vector<1x128xf32>
    tpu.vector_store %arg20[%c3_92, %c128_93], %133 {strides = array<i32>} : memref<4x256xf32, #tpu.memory_space<vmem>>, vector<1x128xf32>,
    %c0_94 = arith.constant 0 : index
    %c0_95 = arith.constant 0 : index
    %135 = vector.load %arg20[%c0_94, %c0_95] : memref<4x256xf32, #tpu.memory_space<vmem>>, vector<4x256xf32>
    %c0_96 = arith.constant 0 : index
    %c0_97 = arith.constant 0 : index
    %136 = vector.load %arg8[%c0_96, %c0_97] : memref<256x256xf32, #tpu.memory_space<vmem>>, vector<256x256xf32>
    %cst_98 = arith.constant dense<0.000000e+00> : vector<4x256xf32>
    %137 = tpu.matmul %135, %136, %cst_98 {dimension_numbers = #tpu.dot_dimension_numbers<[1], [0], [0], [1], [0, 0, 1, 1], [], []>} : vector<4x256xf32>, vector<256x256xf32>, vector<4x256xf32> -> vector<4x256xf32>
    %c0_99 = arith.constant 0 : index
    %c0_100 = arith.constant 0 : index
    %138 = vector.load %arg9[%c0_99, %c0_100] : memref<1x256xf32, #tpu.memory_space<vmem>>, vector<1x256xf32>
    %139 = vector.broadcast %138 : vector<1x256xf32> to vector<4x256xf32>
    %140 = arith.addf %137, %139 : vector<4x256xf32>
    %cst_101 = arith.constant 0.000000e+00 : f32
    %141 = vector.broadcast %cst_101 : f32 to vector<4x256xf32>
    %142 = arith.maximumf %140, %141 : vector<4x256xf32>
    %c0_102 = arith.constant 0 : index
    %c0_103 = arith.constant 0 : index
    %143 = vector.load %arg10[%c0_102, %c0_103] : memref<256x256xf32, #tpu.memory_space<vmem>>, vector<256x256xf32>
    %cst_104 = arith.constant dense<0.000000e+00> : vector<4x256xf32>
    %144 = tpu.matmul %142, %143, %cst_104 {dimension_numbers = #tpu.dot_dimension_numbers<[1], [0], [0], [1], [0, 0, 1, 1], [], []>} : vector<4x256xf32>, vector<256x256xf32>, vector<4x256xf32> -> vector<4x256xf32>
    %c0_105 = arith.constant 0 : index
    %c0_106 = arith.constant 0 : index
    %145 = vector.load %arg11[%c0_105, %c0_106] : memref<1x256xf32, #tpu.memory_space<vmem>>, vector<1x256xf32>
    %146 = vector.broadcast %145 : vector<1x256xf32> to vector<4x256xf32>
    %147 = arith.addf %144, %146 : vector<4x256xf32>
    %c0_107 = arith.constant 0 : index
    %148 = memref.load %arg2[%c0_107] : memref<8xi32, #tpu.memory_space<smem>>
    %149 = vector.extract_strided_slice %147 {offsets = [0, 0], sizes = [1, 128], strides = [1, 1]} : vector<4x256xf32> to vector<1x128xf32>
    %150 = arith.index_cast %148 : i32 to index
    %c0_108 = arith.constant 0 : index
    %151 = vector.load %arg18[%150, %c0_108] : memref<16x128xf32, #tpu.memory_space<vmem>>, vector<1x128xf32>
    %152 = arith.addf %151, %149 : vector<1x128xf32>
    %153 = arith.index_cast %148 : i32 to index
    %c0_109 = arith.constant 0 : index
    %154 = vector.load %arg18[%153, %c0_109] : memref<16x128xf32, #tpu.memory_space<vmem>>, vector<1x128xf32>
    tpu.vector_store %arg18[%153, %c0_109], %152 {strides = array<i32>} : memref<16x128xf32, #tpu.memory_space<vmem>>, vector<1x128xf32>,
    %c1_110 = arith.constant 1 : index
    %155 = memref.load %arg2[%c1_110] : memref<8xi32, #tpu.memory_space<smem>>
    %156 = vector.extract_strided_slice %147 {offsets = [0, 128], sizes = [1, 128], strides = [1, 1]} : vector<4x256xf32> to vector<1x128xf32>
    %157 = arith.index_cast %155 : i32 to index
    %c0_111 = arith.constant 0 : index
    %158 = vector.load %arg18[%157, %c0_111] : memref<16x128xf32, #tpu.memory_space<vmem>>, vector<1x128xf32>
    %159 = arith.addf %158, %156 : vector<1x128xf32>
    %160 = arith.index_cast %155 : i32 to index
    %c0_112 = arith.constant 0 : index
    %161 = vector.load %arg18[%160, %c0_112] : memref<16x128xf32, #tpu.memory_space<vmem>>, vector<1x128xf32>
    tpu.vector_store %arg18[%160, %c0_112], %159 {strides = array<i32>} : memref<16x128xf32, #tpu.memory_space<vmem>>, vector<1x128xf32>,
    %c2_113 = arith.constant 2 : index
    %162 = memref.load %arg2[%c2_113] : memref<8xi32, #tpu.memory_space<smem>>
    %163 = vector.extract_strided_slice %147 {offsets = [1, 0], sizes = [1, 128], strides = [1, 1]} : vector<4x256xf32> to vector<1x128xf32>
    %164 = arith.index_cast %162 : i32 to index
    %c0_114 = arith.constant 0 : index
    %165 = vector.load %arg18[%164, %c0_114] : memref<16x128xf32, #tpu.memory_space<vmem>>, vector<1x128xf32>
    %166 = arith.addf %165, %163 : vector<1x128xf32>
    %167 = arith.index_cast %162 : i32 to index
    %c0_115 = arith.constant 0 : index
    %168 = vector.load %arg18[%167, %c0_115] : memref<16x128xf32, #tpu.memory_space<vmem>>, vector<1x128xf32>
    tpu.vector_store %arg18[%167, %c0_115], %166 {strides = array<i32>} : memref<16x128xf32, #tpu.memory_space<vmem>>, vector<1x128xf32>,
    %c3_116 = arith.constant 3 : index
    %169 = memref.load %arg2[%c3_116] : memref<8xi32, #tpu.memory_space<smem>>
    %170 = vector.extract_strided_slice %147 {offsets = [1, 128], sizes = [1, 128], strides = [1, 1]} : vector<4x256xf32> to vector<1x128xf32>
    %171 = arith.index_cast %169 : i32 to index
    %c0_117 = arith.constant 0 : index
    %172 = vector.load %arg18[%171, %c0_117] : memref<16x128xf32, #tpu.memory_space<vmem>>, vector<1x128xf32>
    %173 = arith.addf %172, %170 : vector<1x128xf32>
    %174 = arith.index_cast %169 : i32 to index
    %c0_118 = arith.constant 0 : index
    %175 = vector.load %arg18[%174, %c0_118] : memref<16x128xf32, #tpu.memory_space<vmem>>, vector<1x128xf32>
    tpu.vector_store %arg18[%174, %c0_118], %173 {strides = array<i32>} : memref<16x128xf32, #tpu.memory_space<vmem>>, vector<1x128xf32>,
    %c4_119 = arith.constant 4 : index
    %176 = memref.load %arg2[%c4_119] : memref<8xi32, #tpu.memory_space<smem>>
    %177 = vector.extract_strided_slice %147 {offsets = [2, 0], sizes = [1, 128], strides = [1, 1]} : vector<4x256xf32> to vector<1x128xf32>
    %178 = arith.index_cast %176 : i32 to index
    %c0_120 = arith.constant 0 : index
    %179 = vector.load %arg18[%178, %c0_120] : memref<16x128xf32, #tpu.memory_space<vmem>>, vector<1x128xf32>
    %180 = arith.addf %179, %177 : vector<1x128xf32>
    %181 = arith.index_cast %176 : i32 to index
    %c0_121 = arith.constant 0 : index
    %182 = vector.load %arg18[%181, %c0_121] : memref<16x128xf32, #tpu.memory_space<vmem>>, vector<1x128xf32>
    tpu.vector_store %arg18[%181, %c0_121], %180 {strides = array<i32>} : memref<16x128xf32, #tpu.memory_space<vmem>>, vector<1x128xf32>,
    %c5_122 = arith.constant 5 : index
    %183 = memref.load %arg2[%c5_122] : memref<8xi32, #tpu.memory_space<smem>>
    %184 = vector.extract_strided_slice %147 {offsets = [2, 128], sizes = [1, 128], strides = [1, 1]} : vector<4x256xf32> to vector<1x128xf32>
    %185 = arith.index_cast %183 : i32 to index
    %c0_123 = arith.constant 0 : index
    %186 = vector.load %arg18[%185, %c0_123] : memref<16x128xf32, #tpu.memory_space<vmem>>, vector<1x128xf32>
    %187 = arith.addf %186, %184 : vector<1x128xf32>
    %188 = arith.index_cast %183 : i32 to index
    %c0_124 = arith.constant 0 : index
    %189 = vector.load %arg18[%188, %c0_124] : memref<16x128xf32, #tpu.memory_space<vmem>>, vector<1x128xf32>
    tpu.vector_store %arg18[%188, %c0_124], %187 {strides = array<i32>} : memref<16x128xf32, #tpu.memory_space<vmem>>, vector<1x128xf32>,
    %c6_125 = arith.constant 6 : index
    %190 = memref.load %arg2[%c6_125] : memref<8xi32, #tpu.memory_space<smem>>
    %191 = vector.extract_strided_slice %147 {offsets = [3, 0], sizes = [1, 128], strides = [1, 1]} : vector<4x256xf32> to vector<1x128xf32>
    %192 = arith.index_cast %190 : i32 to index
    %c0_126 = arith.constant 0 : index
    %193 = vector.load %arg18[%192, %c0_126] : memref<16x128xf32, #tpu.memory_space<vmem>>, vector<1x128xf32>
    %194 = arith.addf %193, %191 : vector<1x128xf32>
    %195 = arith.index_cast %190 : i32 to index
    %c0_127 = arith.constant 0 : index
    %196 = vector.load %arg18[%195, %c0_127] : memref<16x128xf32, #tpu.memory_space<vmem>>, vector<1x128xf32>
    tpu.vector_store %arg18[%195, %c0_127], %194 {strides = array<i32>} : memref<16x128xf32, #tpu.memory_space<vmem>>, vector<1x128xf32>,
    %c7_128 = arith.constant 7 : index
    %197 = memref.load %arg2[%c7_128] : memref<8xi32, #tpu.memory_space<smem>>
    %198 = vector.extract_strided_slice %147 {offsets = [3, 128], sizes = [1, 128], strides = [1, 1]} : vector<4x256xf32> to vector<1x128xf32>
    %199 = arith.index_cast %197 : i32 to index
    %c0_129 = arith.constant 0 : index
    %200 = vector.load %arg18[%199, %c0_129] : memref<16x128xf32, #tpu.memory_space<vmem>>, vector<1x128xf32>
    %201 = arith.addf %200, %198 : vector<1x128xf32>
    %202 = arith.index_cast %197 : i32 to index
    %c0_130 = arith.constant 0 : index
    %203 = vector.load %arg18[%202, %c0_130] : memref<16x128xf32, #tpu.memory_space<vmem>>, vector<1x128xf32>
    tpu.vector_store %arg18[%202, %c0_130], %201 {strides = array<i32>} : memref<16x128xf32, #tpu.memory_space<vmem>>, vector<1x128xf32>,
    %c0_131 = arith.constant 0 : index
    %c0_132 = arith.constant 0 : index
    %204 = vector.load %arg18[%c0_131, %c0_132] : memref<16x128xf32, #tpu.memory_space<vmem>>, vector<16x128xf32>
    %c0_133 = arith.constant 0 : index
    %c0_134 = arith.constant 0 : index
    %205 = vector.load %arg3[%c0_133, %c0_134] : memref<16x128xf32, #tpu.memory_space<vmem>>, vector<16x128xf32>
    %c0_135 = arith.constant 0 : index
    %c0_136 = arith.constant 0 : index
    %206 = vector.load %arg12[%c0_135, %c0_136] : memref<128x128xf32, #tpu.memory_space<vmem>>, vector<128x128xf32>
    %cst_137 = arith.constant dense<0.000000e+00> : vector<16x128xf32>
    %207 = tpu.matmul %204, %206, %cst_137 {dimension_numbers = #tpu.dot_dimension_numbers<[1], [0], [0], [1], [0, 0, 1, 1], [], []>} : vector<16x128xf32>, vector<128x128xf32>, vector<16x128xf32> -> vector<16x128xf32>
    %c0_138 = arith.constant 0 : index
    %c0_139 = arith.constant 0 : index
    %208 = vector.load %arg13[%c0_138, %c0_139] : memref<256x128xf32, #tpu.memory_space<vmem>>, vector<128x128xf32>
    %cst_140 = arith.constant dense<0.000000e+00> : vector<16x128xf32>
    %209 = tpu.matmul %207, %208, %cst_140 {dimension_numbers = #tpu.dot_dimension_numbers<[1], [0], [0], [1], [0, 0, 1, 1], [], []>} : vector<16x128xf32>, vector<128x128xf32>, vector<16x128xf32> -> vector<16x128xf32>
    %c128_141 = arith.constant 128 : index
    %c0_142 = arith.constant 0 : index
    %210 = vector.load %arg13[%c128_141, %c0_142] : memref<256x128xf32, #tpu.memory_space<vmem>>, vector<128x128xf32>
    %cst_143 = arith.constant dense<0.000000e+00> : vector<16x128xf32>
    %211 = tpu.matmul %205, %210, %cst_143 {dimension_numbers = #tpu.dot_dimension_numbers<[1], [0], [0], [1], [0, 0, 1, 1], [], []>} : vector<16x128xf32>, vector<128x128xf32>, vector<16x128xf32> -> vector<16x128xf32>
    %212 = arith.addf %209, %211 : vector<16x128xf32>
    %c0_144 = arith.constant 0 : index
    %c0_145 = arith.constant 0 : index
    %213 = vector.load %arg14[%c0_144, %c0_145] : memref<1x128xf32, #tpu.memory_space<vmem>>, vector<1x128xf32>
    %214 = vector.broadcast %213 : vector<1x128xf32> to vector<16x128xf32>
    %215 = arith.addf %212, %214 : vector<16x128xf32>
    %cst_146 = arith.constant 0.000000e+00 : f32
    %216 = vector.broadcast %cst_146 : f32 to vector<16x128xf32>
    %217 = arith.maximumf %215, %216 : vector<16x128xf32>
    %c0_147 = arith.constant 0 : index
    %c0_148 = arith.constant 0 : index
    %218 = vector.load %arg15[%c0_147, %c0_148] : memref<128x128xf32, #tpu.memory_space<vmem>>, vector<128x128xf32>
    %cst_149 = arith.constant dense<0.000000e+00> : vector<16x128xf32>
    %219 = tpu.matmul %217, %218, %cst_149 {dimension_numbers = #tpu.dot_dimension_numbers<[1], [0], [0], [1], [0, 0, 1, 1], [], []>} : vector<16x128xf32>, vector<128x128xf32>, vector<16x128xf32> -> vector<16x128xf32>
    %c0_150 = arith.constant 0 : index
    %c0_151 = arith.constant 0 : index
    %220 = vector.load %arg16[%c0_150, %c0_151] : memref<1x128xf32, #tpu.memory_space<vmem>>, vector<1x128xf32>
    %221 = vector.broadcast %220 : vector<1x128xf32> to vector<16x128xf32>
    %222 = arith.addf %219, %221 : vector<16x128xf32>
    %c0_152 = arith.constant 0 : index
    %c0_153 = arith.constant 0 : index
    %223 = vector.load %arg17[%c0_152, %c0_153] : memref<16x128xf32, #tpu.memory_space<vmem>>, vector<16x128xf32>
    tpu.vector_store %arg17[%c0_152, %c0_153], %222 {strides = array<i32>} : memref<16x128xf32, #tpu.memory_space<vmem>>, vector<16x128xf32>,
    return
  }
  func.func @transform_0(%arg0: i32, %arg1: memref<8xi32, #tpu.memory_space<smem>>, %arg2: memref<8xi32, #tpu.memory_space<smem>>) -> (i32, i32) {
    %c0_i32 = arith.constant 0 : i32
    %c0_i32_0 = arith.constant 0 : i32
    %c0_i32_1 = arith.constant 0 : i32
    return %c0_i32, %c0_i32_0 : i32, i32
  }
  func.func @transform_1(%arg0: i32, %arg1: memref<8xi32, #tpu.memory_space<smem>>, %arg2: memref<8xi32, #tpu.memory_space<smem>>) -> (i32, i32) {
    %c0_i32 = arith.constant 0 : i32
    %c0_i32_0 = arith.constant 0 : i32
    %c0_i32_1 = arith.constant 0 : i32
    return %c0_i32, %c0_i32_0 : i32, i32
  }
  func.func @transform_2(%arg0: i32, %arg1: memref<8xi32, #tpu.memory_space<smem>>, %arg2: memref<8xi32, #tpu.memory_space<smem>>) -> (i32, i32) {
    %c0_i32 = arith.constant 0 : i32
    %c0_i32_0 = arith.constant 0 : i32
    %c0_i32_1 = arith.constant 0 : i32
    return %c0_i32, %c0_i32_0 : i32, i32
  }
  func.func @transform_3(%arg0: i32, %arg1: memref<8xi32, #tpu.memory_space<smem>>, %arg2: memref<8xi32, #tpu.memory_space<smem>>) -> (i32, i32) {
    %c0_i32 = arith.constant 0 : i32
    %c0_i32_0 = arith.constant 0 : i32
    %c0_i32_1 = arith.constant 0 : i32
    return %c0_i32, %c0_i32_0 : i32, i32
  }
  func.func @transform_4(%arg0: i32, %arg1: memref<8xi32, #tpu.memory_space<smem>>, %arg2: memref<8xi32, #tpu.memory_space<smem>>) -> (i32, i32) {
    %c0_i32 = arith.constant 0 : i32
    %c0_i32_0 = arith.constant 0 : i32
    %c0_i32_1 = arith.constant 0 : i32
    return %c0_i32, %c0_i32_0 : i32, i32
  }
  func.func @transform_5(%arg0: i32, %arg1: memref<8xi32, #tpu.memory_space<smem>>, %arg2: memref<8xi32, #tpu.memory_space<smem>>) -> (i32, i32) {
    %c0_i32 = arith.constant 0 : i32
    %c0_i32_0 = arith.constant 0 : i32
    %c0_i32_1 = arith.constant 0 : i32
    return %c0_i32, %c0_i32_0 : i32, i32
  }
  func.func @transform_6(%arg0: i32, %arg1: memref<8xi32, #tpu.memory_space<smem>>, %arg2: memref<8xi32, #tpu.memory_space<smem>>) -> (i32, i32) {
    %c0_i32 = arith.constant 0 : i32
    %c0_i32_0 = arith.constant 0 : i32
    %c0_i32_1 = arith.constant 0 : i32
    return %c0_i32, %c0_i32_0 : i32, i32
  }
  func.func @transform_7(%arg0: i32, %arg1: memref<8xi32, #tpu.memory_space<smem>>, %arg2: memref<8xi32, #tpu.memory_space<smem>>) -> (i32, i32) {
    %c0_i32 = arith.constant 0 : i32
    %c0_i32_0 = arith.constant 0 : i32
    %c0_i32_1 = arith.constant 0 : i32
    return %c0_i32, %c0_i32_0 : i32, i32
  }
  func.func @transform_8(%arg0: i32, %arg1: memref<8xi32, #tpu.memory_space<smem>>, %arg2: memref<8xi32, #tpu.memory_space<smem>>) -> (i32, i32) {
    %c0_i32 = arith.constant 0 : i32
    %c0_i32_0 = arith.constant 0 : i32
    %c0_i32_1 = arith.constant 0 : i32
    return %c0_i32, %c0_i32_0 : i32, i32
  }
  func.func @transform_9(%arg0: i32, %arg1: memref<8xi32, #tpu.memory_space<smem>>, %arg2: memref<8xi32, #tpu.memory_space<smem>>) -> (i32, i32) {
    %c0_i32 = arith.constant 0 : i32
    %c0_i32_0 = arith.constant 0 : i32
    %c0_i32_1 = arith.constant 0 : i32
    return %c0_i32, %c0_i32_0 : i32, i32
  }
  func.func @transform_10(%arg0: i32, %arg1: memref<8xi32, #tpu.memory_space<smem>>, %arg2: memref<8xi32, #tpu.memory_space<smem>>) -> (i32, i32) {
    %c0_i32 = arith.constant 0 : i32
    %c0_i32_0 = arith.constant 0 : i32
    %c0_i32_1 = arith.constant 0 : i32
    return %c0_i32, %c0_i32_0 : i32, i32
  }
  func.func @transform_11(%arg0: i32, %arg1: memref<8xi32, #tpu.memory_space<smem>>, %arg2: memref<8xi32, #tpu.memory_space<smem>>) -> (i32, i32) {
    %c0_i32 = arith.constant 0 : i32
    %c0_i32_0 = arith.constant 0 : i32
    %c0_i32_1 = arith.constant 0 : i32
    return %c0_i32, %c0_i32_0 : i32, i32
  }
  func.func @transform_12(%arg0: i32, %arg1: memref<8xi32, #tpu.memory_space<smem>>, %arg2: memref<8xi32, #tpu.memory_space<smem>>) -> (i32, i32) {
    %c0_i32 = arith.constant 0 : i32
    %c0_i32_0 = arith.constant 0 : i32
    %c0_i32_1 = arith.constant 0 : i32
    return %c0_i32, %c0_i32_0 : i32, i32
  }
  func.func @transform_13(%arg0: i32, %arg1: memref<8xi32, #tpu.memory_space<smem>>, %arg2: memref<8xi32, #tpu.memory_space<smem>>) -> (i32, i32) {
    %c0_i32 = arith.constant 0 : i32
    %c0_i32_0 = arith.constant 0 : i32
    %c0_i32_1 = arith.constant 0 : i32
    return %c0_i32, %c0_i32_0 : i32, i32
  }
  func.func @transform_14(%arg0: i32, %arg1: memref<8xi32, #tpu.memory_space<smem>>, %arg2: memref<8xi32, #tpu.memory_space<smem>>) -> (i32, i32) {
    %c0_i32 = arith.constant 0 : i32
    %c0_i32_0 = arith.constant 0 : i32
    %c0_i32_1 = arith.constant 0 : i32
    return %c0_i32, %c0_i32_0 : i32, i32
  }
}

</mosaic_0001>

<llo_original>
// kernel: tpu_custom_call.1
$region0: #{tpu_custom_call.1}
  #allocation0 [shape = 'u32[]', space=smem, size = 0x4, offset = 0x4, fixed_abs, tag = 'smem constant byte address 0x4 - core index']
  #allocation1 [shape = 'u32[72,128]{1,0:T(1,128)}', space=vmem, size = 0x9000, scoped, tag = 'internal scratch']
  #allocation2 [shape = 'f32[16,128]{1,0:T(8,128)}', space=vmem, size = 0x2000, scoped, tag = 'scratch operand']
  #allocation3 [shape = 'f32[8,128]{1,0:T(8,128)}', space=vmem, size = 0x1000, scoped, tag = 'scratch operand']
  #allocation4 [shape = 'f32[4,256]{1,0:T(4,128)}', space=vmem, size = 0x1000, scoped, tag = 'scratch operand']
  #allocation5 [shape = 's32[1]{0}', space=sflag, size = 0x4, scoped, tag = 'scoped memory for tpu_custom_call.1']
  #allocation6 [shape = 'u8[512]{0}', space=smem, size = 0x200, scoped, tag = 'prefetched SMEM operand 0']
  #allocation7 [shape = 'u8[512]{0}', space=smem, size = 0x200, scoped, tag = 'prefetched SMEM operand 1']
  %s0 = inlined_call_operand.hbm [shape: s32[8], index: 0, kind: input, shape index: {}]
  %s1 = inlined_call_operand.hbm [shape: s32[8], index: 1, kind: input, shape index: {}]
  %s2 = inlined_call_operand.hbm [shape: f32[16,128], index: 2, kind: input, shape index: {}]
  %s3 = inlined_call_operand.hbm [shape: f32[128,128], index: 3, kind: input, shape index: {}]
  %s4 = inlined_call_operand.hbm [shape: f32[1,128], index: 4, kind: input, shape index: {}]
  %s5 = inlined_call_operand.hbm [shape: f32[128,128], index: 5, kind: input, shape index: {}]
  %s6 = inlined_call_operand.vmem [shape: f32[1,128], index: 6, kind: input, shape index: {}]
  %s7 = inlined_call_operand.hbm [shape: f32[256,256], index: 7, kind: input, shape index: {}]
  %s8 = inlined_call_operand.vmem [shape: f32[1,256], index: 8, kind: input, shape index: {}]
  %s9 = inlined_call_operand.hbm [shape: f32[256,256], index: 9, kind: input, shape index: {}]
  %s10 = inlined_call_operand.vmem [shape: f32[1,256], index: 10, kind: input, shape index: {}]
  %s11 = inlined_call_operand.hbm [shape: f32[128,128], index: 11, kind: input, shape index: {}]
  %s12 = inlined_call_operand.hbm [shape: f32[256,128], index: 12, kind: input, shape index: {}]
  %s13 = inlined_call_operand.vmem [shape: f32[1,128], index: 13, kind: input, shape index: {}]
  %s14 = inlined_call_operand.hbm [shape: f32[128,128], index: 14, kind: input, shape index: {}]
  %s15 = inlined_call_operand.vmem [shape: f32[1,128], index: 15, kind: input, shape index: {}]
  %s16 = inlined_call_operand.hbm [shape: f32[16,128], index: 16, kind: output, shape index: {}]
  %s17 = sld [smem:[#allocation0]]
  $region102: #{tpu_custom_call.1} parent=0
    _
  %s19 = ssub.s32 1, %s17
  %s20 = scalar_select 0, %s19, %s17
  %s22 = sshll.u32 %s0, 4
  %s23 = int_to_ptr.hbm [resolvable:$true] %s22
  %25 = dma.hbm_to_smem %s23, 16, [#allocation6], [#allocation5]
  %s27 = sshll.u32 %s1, 4
  %s28 = int_to_ptr.hbm [resolvable:$true] %s27
  %30 = dma.hbm_to_smem %s28, 16, [#allocation7], [#allocation5]
  %32 = dma.done [#allocation5], 32
  %33 = sfence
  $region1: #{tpu_custom_call.1} parent=0
    #allocation8 [shape = 'u8[8192]{0}', space=vmem, size = 0x2000, scoped, tag = 'input window, operand 2, single buffered']
    #allocation9 [shape = 's32[1]{0}', space=sflag, size = 0x4, scoped, tag = 'scoped memory for tpu_custom_call.1']
    #allocation10 [shape = 's32[1]{0}', space=sflag, size = 0x4, scoped, tag = 'scoped memory for tpu_custom_call.1']
    #allocation11 [shape = 'u8[65536]{0}', space=vmem, size = 0x10000, scoped, tag = 'input window, operand 3, single buffered']
    #allocation12 [shape = 's32[1]{0}', space=sflag, size = 0x4, scoped, tag = 'scoped memory for tpu_custom_call.1']
    #allocation13 [shape = 'u8[512]{0}', space=vmem, size = 0x400, scoped, tag = 'input window, operand 4, single buffered']
    #allocation14 [shape = 'u8[65536]{0}', space=vmem, size = 0x10000, scoped, tag = 'input window, operand 5, single buffered']
    #allocation15 [shape = 's32[1]{0}', space=sflag, size = 0x4, scoped, tag = 'scoped memory for tpu_custom_call.1']
    #allocation16 [shape = 'u8[262144]{0}', space=vmem, size = 0x40000, scoped, tag = 'input window, operand 7, single buffered']
    #allocation17 [shape = 'u8[262144]{0}', space=vmem, size = 0x40000, scoped, tag = 'input window, operand 9, single buffered']
    #allocation18 [shape = 's32[1]{0}', space=sflag, size = 0x4, scoped, tag = 'scoped memory for tpu_custom_call.1']
    #allocation19 [shape = 'u8[65536]{0}', space=vmem, size = 0x10000, scoped, tag = 'input window, operand 11, single buffered']
    #allocation20 [shape = 'u8[131072]{0}', space=vmem, size = 0x20000, scoped, tag = 'input window, operand 12, single buffered']
    #allocation21 [shape = 's32[1]{0}', space=sflag, size = 0x4, scoped, tag = 'scoped memory for tpu_custom_call.1']
    #allocation22 [shape = 'u8[65536]{0}', space=vmem, size = 0x10000, scoped, tag = 'input window, operand 14, single buffered']
    #allocation23 [shape = 'u8[8192]{0}', space=vmem, size = 0x2000, scoped, tag = 'output window, operand 0, single buffered']
    %34 = vsyncpa [#allocation9], 0
    %35 = vsyncpa [#allocation12], 0
    %36 = vsyncpa [#allocation15], 0
    %37 = vsyncpa [#allocation18], 0
    %38 = vsyncpa [#allocation21], 0
    %39 = vsyncpa [#allocation10], 0
    // Predicated region
    $region2: #{tpu_custom_call.1} parent=1 // pred_check
      _
    $region3: #{tpu_custom_call.1} parent=1 // pred_check_branch
      %41 = sbr.rel (0) target = $region5
    $region4: #{tpu_custom_call.1} parent=1 // pred_region
      %43 = vsyncadd [#allocation9], 0
      %s44 = sshll.u32 %s2, 4
      %s45 = int_to_ptr.hbm [resolvable:$true] %s44
      %s46 = sshll.u32 [#allocation8], 4
      %s47 = int_to_ptr.vmem [resolvable:$true] %s46
      %52 = dma.hbm_to_vmem [thread:$0]  %s45, 256, %s47, [#allocation9], 128, 128, 8
    $region5: #{tpu_custom_call.1} parent=1 // pred_fallthru
      _
    // Predicated region
    $region6: #{tpu_custom_call.1} parent=1 // pred_check
      _
    $region7: #{tpu_custom_call.1} parent=1 // pred_check_branch
      %54 = sbr.rel (0) target = $region9
    $region8: #{tpu_custom_call.1} parent=1 // pred_region
      %56 = vsyncadd [#allocation12], 0
      %s57 = sshll.u32 %s3, 4
      %s58 = int_to_ptr.hbm [resolvable:$true] %s57
      %s59 = sshll.u32 [#allocation11], 4
      %s60 = int_to_ptr.vmem [resolvable:$true] %s59
      %65 = dma.hbm_to_vmem [thread:$0]  %s58, 2048, %s60, [#allocation12], 128, 128, 8
    $region9: #{tpu_custom_call.1} parent=1 // pred_fallthru
      _
    // Predicated region
    $region10: #{tpu_custom_call.1} parent=1 // pred_check
      _
    $region11: #{tpu_custom_call.1} parent=1 // pred_check_branch
      %67 = sbr.rel (0) target = $region13
    $region12: #{tpu_custom_call.1} parent=1 // pred_region
      %69 = vsyncadd [#allocation12], 0
      %s71 = sshll.u32 %s4, 4
      %s72 = int_to_ptr.hbm [resolvable:$true] %s71
      %s73 = sshll.u32 [#allocation13], 4
      %s74 = int_to_ptr.vmem [resolvable:$true] %s73
      %76 = dma.hbm_to_vmem [thread:$0]  %s72, 16, %s74, [#allocation12]
    $region13: #{tpu_custom_call.1} parent=1 // pred_fallthru
      _
    // Predicated region
    $region14: #{tpu_custom_call.1} parent=1 // pred_check
      _
    $region15: #{tpu_custom_call.1} parent=1 // pred_check_branch
      %78 = sbr.rel (0) target = $region17
    $region16: #{tpu_custom_call.1} parent=1 // pred_region
      %80 = vsyncadd [#allocation15], 0
      %s81 = sshll.u32 %s5, 4
      %s82 = int_to_ptr.hbm [resolvable:$true] %s81
      %s83 = sshll.u32 [#allocation14], 4
      %s84 = int_to_ptr.vmem [resolvable:$true] %s83
      %89 = dma.hbm_to_vmem [thread:$0]  %s82, 2048, %s84, [#allocation15], 128, 128, 8
    $region17: #{tpu_custom_call.1} parent=1 // pred_fallthru
      _
    // Predicated region
    $region18: #{tpu_custom_call.1} parent=1 // pred_check
      _
    $region19: #{tpu_custom_call.1} parent=1 // pred_check_branch
      %91 = sbr.rel (0) target = $region21
    $region20: #{tpu_custom_call.1} parent=1 // pred_region
      _
    $region21: #{tpu_custom_call.1} parent=1 // pred_fallthru
      _
    // Predicated region
    $region22: #{tpu_custom_call.1} parent=1 // pred_check
      _
    $region23: #{tpu_custom_call.1} parent=1 // pred_check_branch
      %93 = sbr.rel (0) target = $region25
    $region24: #{tpu_custom_call.1} parent=1 // pred_region
      %95 = vsyncadd [#allocation15], 0
      %s96 = sshll.u32 %s7, 4
      %s97 = int_to_ptr.hbm [resolvable:$true] %s96
      %s98 = sshll.u32 [#allocation16], 4
      %s99 = int_to_ptr.vmem [resolvable:$true] %s98
      %104 = dma.hbm_to_vmem [thread:$0]  %s97, 8192, %s99, [#allocation15], 256, 256, 16
    $region25: #{tpu_custom_call.1} parent=1 // pred_fallthru
      _
    // Predicated region
    $region26: #{tpu_custom_call.1} parent=1 // pred_check
      _
    $region27: #{tpu_custom_call.1} parent=1 // pred_check_branch
      %106 = sbr.rel (0) target = $region29
    $region28: #{tpu_custom_call.1} parent=1 // pred_region
      _
    $region29: #{tpu_custom_call.1} parent=1 // pred_fallthru
      _
    // Predicated region
    $region30: #{tpu_custom_call.1} parent=1 // pred_check
      _
    $region31: #{tpu_custom_call.1} parent=1 // pred_check_branch
      %108 = sbr.rel (0) target = $region33
    $region32: #{tpu_custom_call.1} parent=1 // pred_region
      %110 = vsyncadd [#allocation18], 0
      %s111 = sshll.u32 %s9, 4
      %s112 = int_to_ptr.hbm [resolvable:$true] %s111
      %s113 = sshll.u32 [#allocation17], 4
      %s114 = int_to_ptr.vmem [resolvable:$true] %s113
      %119 = dma.hbm_to_vmem [thread:$0]  %s112, 8192, %s114, [#allocation18], 256, 256, 16
    $region33: #{tpu_custom_call.1} parent=1 // pred_fallthru
      _
    // Predicated region
    $region34: #{tpu_custom_call.1} parent=1 // pred_check
      _
    $region35: #{tpu_custom_call.1} parent=1 // pred_check_branch
      %121 = sbr.rel (0) target = $region37
    $region36: #{tpu_custom_call.1} parent=1 // pred_region
      _
    $region37: #{tpu_custom_call.1} parent=1 // pred_fallthru
      _
    // Predicated region
    $region38: #{tpu_custom_call.1} parent=1 // pred_check
      _
    $region39: #{tpu_custom_call.1} parent=1 // pred_check_branch
      %123 = sbr.rel (0) target = $region41
    $region40: #{tpu_custom_call.1} parent=1 // pred_region
      %125 = vsyncadd [#allocation18], 0
      %s126 = sshll.u32 %s11, 4
      %s127 = int_to_ptr.hbm [resolvable:$true] %s126
      %s128 = sshll.u32 [#allocation19], 4
      %s129 = int_to_ptr.vmem [resolvable:$true] %s128
      %134 = dma.hbm_to_vmem [thread:$0]  %s127, 2048, %s129, [#allocation18], 128, 128, 8
    $region41: #{tpu_custom_call.1} parent=1 // pred_fallthru
      _
    // Predicated region
    $region42: #{tpu_custom_call.1} parent=1 // pred_check
      _
    $region43: #{tpu_custom_call.1} parent=1 // pred_check_branch
      %136 = sbr.rel (0) target = $region45
    $region44: #{tpu_custom_call.1} parent=1 // pred_region
      %138 = vsyncadd [#allocation21], 0
      %s139 = sshll.u32 %s12, 4
      %s140 = int_to_ptr.hbm [resolvable:$true] %s139
      %s141 = sshll.u32 [#allocation20], 4
      %s142 = int_to_ptr.vmem [resolvable:$true] %s141
      %147 = dma.hbm_to_vmem [thread:$0]  %s140, 4096, %s142, [#allocation21], 128, 128, 8
    $region45: #{tpu_custom_call.1} parent=1 // pred_fallthru
      _
    // Predicated region
    $region46: #{tpu_custom_call.1} parent=1 // pred_check
      _
    $region47: #{tpu_custom_call.1} parent=1 // pred_check_branch
      %149 = sbr.rel (0) target = $region49
    $region48: #{tpu_custom_call.1} parent=1 // pred_region
      _
    $region49: #{tpu_custom_call.1} parent=1 // pred_fallthru
      _
    // Predicated region
    $region50: #{tpu_custom_call.1} parent=1 // pred_check
      _
    $region51: #{tpu_custom_call.1} parent=1 // pred_check_branch
      %151 = sbr.rel (0) target = $region53
    $region52: #{tpu_custom_call.1} parent=1 // pred_region
      %153 = vsyncadd [#allocation21], 0
      %s154 = sshll.u32 %s14, 4
      %s155 = int_to_ptr.hbm [resolvable:$true] %s154
      %s156 = sshll.u32 [#allocation22], 4
      %s157 = int_to_ptr.vmem [resolvable:$true] %s156
      %162 = dma.hbm_to_vmem [thread:$0]  %s155, 2048, %s157, [#allocation21], 128, 128, 8
    $region53: #{tpu_custom_call.1} parent=1 // pred_fallthru
      _
    // Predicated region
    $region54: #{tpu_custom_call.1} parent=1 // pred_check
      _
    $region55: #{tpu_custom_call.1} parent=1 // pred_check_branch
      %164 = sbr.rel (0) target = $region57
    $region56: #{tpu_custom_call.1} parent=1 // pred_region
      _
    $region57: #{tpu_custom_call.1} parent=1 // pred_fallthru
      _
    // Predicated region
    $region58: #{tpu_custom_call.1} parent=1 // pred_check
      _
    $region59: #{tpu_custom_call.1} parent=1 // pred_check_branch
      %166 = sbr.rel (0) target = $region61
    $region60: #{tpu_custom_call.1} parent=1 // pred_region
      %168 = dma.done [#allocation9], 256
    $region61: #{tpu_custom_call.1} parent=1 // pred_fallthru
      _
    // Predicated region
    $region62: #{tpu_custom_call.1} parent=1 // pred_check
      _
    $region63: #{tpu_custom_call.1} parent=1 // pred_check_branch
      %170 = sbr.rel (0) target = $region65
    $region64: #{tpu_custom_call.1} parent=1 // pred_region
      %172 = dma.done [#allocation12], 2048
    $region65: #{tpu_custom_call.1} parent=1 // pred_fallthru
      _
    // Predicated region
    $region66: #{tpu_custom_call.1} parent=1 // pred_check
      _
    $region67: #{tpu_custom_call.1} parent=1 // pred_check_branch
      %174 = sbr.rel (0) target = $region69
    $region68: #{tpu_custom_call.1} parent=1 // pred_region
      %176 = dma.done [#allocation12], 16
    $region69: #{tpu_custom_call.1} parent=1 // pred_fallthru
      _
    // Predicated region
    $region70: #{tpu_custom_call.1} parent=1 // pred_check
      _
    $region71: #{tpu_custom_call.1} parent=1 // pred_check_branch
      %178 = sbr.rel (0) target = $region73
    $region72: #{tpu_custom_call.1} parent=1 // pred_region
      %180 = dma.done [#allocation15], 2048
    $region73: #{tpu_custom_call.1} parent=1 // pred_fallthru
      _
    // Predicated region
    $region74: #{tpu_custom_call.1} parent=1 // pred_check
      _
    $region75: #{tpu_custom_call.1} parent=1 // pred_check_branch
      %182 = sbr.rel (0) target = $region77
    $region76: #{tpu_custom_call.1} parent=1 // pred_region
      %184 = dma.done [#allocation15], 8192
    $region77: #{tpu_custom_call.1} parent=1 // pred_fallthru
      _
    // Predicated region
    $region78: #{tpu_custom_call.1} parent=1 // pred_check
      _
    $region79: #{tpu_custom_call.1} parent=1 // pred_check_branch
      %186 = sbr.rel (0) target = $region81
    $region80: #{tpu_custom_call.1} parent=1 // pred_region
      %188 = dma.done [#allocation18], 8192
    $region81: #{tpu_custom_call.1} parent=1 // pred_fallthru
      _
    // Predicated region
    $region82: #{tpu_custom_call.1} parent=1 // pred_check
      _
    $region83: #{tpu_custom_call.1} parent=1 // pred_check_branch
      %190 = sbr.rel (0) target = $region85
    $region84: #{tpu_custom_call.1} parent=1 // pred_region
      %192 = dma.done [#allocation18], 2048
    $region85: #{tpu_custom_call.1} parent=1 // pred_fallthru
      _
    // Predicated region
    $region86: #{tpu_custom_call.1} parent=1 // pred_check
      _
    $region87: #{tpu_custom_call.1} parent=1 // pred_check_branch
      %194 = sbr.rel (0) target = $region89
    $region88: #{tpu_custom_call.1} parent=1 // pred_region
      %196 = dma.done [#allocation21], 4096
    $region89: #{tpu_custom_call.1} parent=1 // pred_fallthru
      _
    // Predicated region
    $region90: #{tpu_custom_call.1} parent=1 // pred_check
      _
    $region91: #{tpu_custom_call.1} parent=1 // pred_check_branch
      %198 = sbr.rel (0) target = $region93
    $region92: #{tpu_custom_call.1} parent=1 // pred_region
      %200 = dma.done [#allocation21], 2048
    $region93: #{tpu_custom_call.1} parent=1 // pred_fallthru
      _
    %201 = vst [vmem:[#allocation2] sm:$0xff] 0.0
    %202 = vst [vmem:[#allocation2 + $0x8] sm:$0xff] 0.0
    %s203 = sld [smem:[#allocation6]]
    %s204 = scalar_lea.vmem [#allocation8], %s203
    %v205 = vld [vmem:[%s204] sm:$0x1]
    %206 = vst [vmem:[#allocation3] sm:$0x1] %v205
    %s207 = sld [smem:[#allocation6 + $0x1]]
    %s208 = scalar_lea.vmem [#allocation8], %s207
    %v209 = vld [vmem:[%s208] sm:$0x1]
    %210 = vst [vmem:[#allocation3 + $0x1] sm:$0x1] %v209
    %s211 = sld [smem:[#allocation6 + $0x2]]
    %s212 = scalar_lea.vmem [#allocation8], %s211
    %v213 = vld [vmem:[%s212] sm:$0x1]
    %214 = vst [vmem:[#allocation3 + $0x2] sm:$0x1] %v213
    %s215 = sld [smem:[#allocation6 + $0x3]]
    %s216 = scalar_lea.vmem [#allocation8], %s215
    %v217 = vld [vmem:[%s216] sm:$0x1]
    %218 = vst [vmem:[#allocation3 + $0x3] sm:$0x1] %v217
    %s219 = sld [smem:[#allocation6 + $0x4]]
    %s220 = scalar_lea.vmem [#allocation8], %s219
    %v221 = vld [vmem:[%s220] sm:$0x1]
    %222 = vst [vmem:[#allocation3 + $0x4] sm:$0x1] %v221
    %s223 = sld [smem:[#allocation6 + $0x5]]
    %s224 = scalar_lea.vmem [#allocation8], %s223
    %v225 = vld [vmem:[%s224] sm:$0x1]
    %226 = vst [vmem:[#allocation3 + $0x5] sm:$0x1] %v225
    %s227 = sld [smem:[#allocation6 + $0x6]]
    %s228 = scalar_lea.vmem [#allocation8], %s227
    %v229 = vld [vmem:[%s228] sm:$0x1]
    %230 = vst [vmem:[#allocation3 + $0x6] sm:$0x1] %v229
    %s231 = sld [smem:[#allocation6 + $0x7]]
    %s232 = scalar_lea.vmem [#allocation8], %s231
    %v233 = vld [vmem:[%s232] sm:$0x1]
    %234 = vst [vmem:[#allocation3 + $0x7] sm:$0x1] %v233
    %v235 = vld [vmem:[#allocation3] sm:$0xff]
    %v236 = vld [vmem:[#allocation11] sm:$0xff]
    %v237 = vld [vmem:[#allocation11 + $0x8] sm:$0xff]
    %v238 = vld [vmem:[#allocation11 + $0x10] sm:$0xff]
    %v239 = vld [vmem:[#allocation11 + $0x18] sm:$0xff]
    %v240 = vld [vmem:[#allocation11 + $0x20] sm:$0xff]
    %v241 = vld [vmem:[#allocation11 + $0x28] sm:$0xff]
    %v242 = vld [vmem:[#allocation11 + $0x30] sm:$0xff]
    %v243 = vld [vmem:[#allocation11 + $0x38] sm:$0xff]
    %v244 = vld [vmem:[#allocation11 + $0x40] sm:$0xff]
    %v245 = vld [vmem:[#allocation11 + $0x48] sm:$0xff]
    %v246 = vld [vmem:[#allocation11 + $0x50] sm:$0xff]
    %v247 = vld [vmem:[#allocation11 + $0x58] sm:$0xff]
    %v248 = vld [vmem:[#allocation11 + $0x60] sm:$0xff]
    %v249 = vld [vmem:[#allocation11 + $0x68] sm:$0xff]
    %v250 = vld [vmem:[#allocation11 + $0x70] sm:$0xff]
    %v251 = vld [vmem:[#allocation11 + $0x78] sm:$0xff]
    %v252 = vld [vmem:[#allocation13] sm:$0x1]
    %v254 = vperm.slane %v252, 0
    %256 = vmatpush.msra.mxu0 %v251
    %257 = vmatpush.msra.mxu0 %v250
    %258 = vmatpush.msra.mxu0 %v249
    %259 = vmatpush.msra.mxu0 %v248
    %260 = vmatpush.msra.mxu0 %v247
    %261 = vmatpush.msra.mxu0 %v246
    %262 = vmatpush.msra.mxu0 %v245
    %263 = vmatpush.msra.mxu0 %v244
    %264 = vmatpush.msra.mxu0 %v243
    %265 = vmatpush.msra.mxu0 %v242
    %266 = vmatpush.msra.mxu0 %v241
    %267 = vmatpush.msra.mxu0 %v240
    %268 = vmatpush.msra.mxu0 %v239
    %269 = vmatpush.msra.mxu0 %v238
    %270 = vmatpush.msra.mxu0 %v237
    %271 = vmatpush.msra.mxu0 %v236
    %272 = vmatmul.f32.gmra.mxu0 %v235
    %v273 = vpop.f32.mrf.mxu0
    %v274 = vadd.f32 %v254, %v273
    %275 = vdwg.mxu0
    %v276 = vmax.f32 %v274, 0.0
    %v277 = vld [vmem:[#allocation14] sm:$0xff]
    %v278 = vld [vmem:[#allocation14 + $0x8] sm:$0xff]
    %v279 = vld [vmem:[#allocation14 + $0x10] sm:$0xff]
    %v280 = vld [vmem:[#allocation14 + $0x18] sm:$0xff]
    %v281 = vld [vmem:[#allocation14 + $0x20] sm:$0xff]
    %v282 = vld [vmem:[#allocation14 + $0x28] sm:$0xff]
    %v283 = vld [vmem:[#allocation14 + $0x30] sm:$0xff]
    %v284 = vld [vmem:[#allocation14 + $0x38] sm:$0xff]
    %v285 = vld [vmem:[#allocation14 + $0x40] sm:$0xff]
    %v286 = vld [vmem:[#allocation14 + $0x48] sm:$0xff]
    %v287 = vld [vmem:[#allocation14 + $0x50] sm:$0xff]
    %v288 = vld [vmem:[#allocation14 + $0x58] sm:$0xff]
    %v289 = vld [vmem:[#allocation14 + $0x60] sm:$0xff]
    %v290 = vld [vmem:[#allocation14 + $0x68] sm:$0xff]
    %v291 = vld [vmem:[#allocation14 + $0x70] sm:$0xff]
    %v292 = vld [vmem:[#allocation14 + $0x78] sm:$0xff]
    %v293 = vld [vmem:[%s6] sm:$0x1]
    %v295 = vperm.slane %v293, 0
    %297 = vmatpush.msra.mxu0 %v292
    %298 = vmatpush.msra.mxu0 %v291
    %299 = vmatpush.msra.mxu0 %v290
    %300 = vmatpush.msra.mxu0 %v289
    %301 = vmatpush.msra.mxu0 %v288
    %302 = vmatpush.msra.mxu0 %v287
    %303 = vmatpush.msra.mxu0 %v286
    %304 = vmatpush.msra.mxu0 %v285
    %305 = vmatpush.msra.mxu0 %v284
    %306 = vmatpush.msra.mxu0 %v283
    %307 = vmatpush.msra.mxu0 %v282
    %308 = vmatpush.msra.mxu0 %v281
    %309 = vmatpush.msra.mxu0 %v280
    %310 = vmatpush.msra.mxu0 %v279
    %311 = vmatpush.msra.mxu0 %v278
    %312 = vmatpush.msra.mxu0 %v277
    %313 = vmatmul.f32.gmra.mxu0 %v276
    %v314 = vpop.f32.mrf.mxu0
    %v315 = vadd.f32 %v295, %v314
    %316 = vdwg.mxu0
    %s317 = sld [smem:[#allocation6]]
    %s318 = scalar_lea.vmem [#allocation2], %s317
    %v319 = vld [vmem:[%s318] sm:$0x1]
    %v320 = vadd.f32 %v319, %v315
    %321 = vst [vmem:[%s318] sm:$0x1] %v320
    %s322 = sld [smem:[#allocation6 + $0x1]]
    %s323 = scalar_lea.vmem [#allocation2], %s322
    %v324 = vld [vmem:[%s323] sm:$0x1]
    %v326 = vrot.slane %v315, 1
    %v328 = vadd.f32 %v324, %v326
    %329 = vst [vmem:[%s323] sm:$0x1] %v328
    %s330 = sld [smem:[#allocation6 + $0x2]]
    %s331 = scalar_lea.vmem [#allocation2], %s330
    %v332 = vld [vmem:[%s331] sm:$0x1]
    %v333 = vrot.slane %v315, 2
    %v335 = vadd.f32 %v332, %v333
    %336 = vst [vmem:[%s331] sm:$0x1] %v335
    %s337 = sld [smem:[#allocation6 + $0x3]]
    %s338 = scalar_lea.vmem [#allocation2], %s337
    %v339 = vld [vmem:[%s338] sm:$0x1]
    %v340 = vrot.slane %v315, 3
    %v342 = vadd.f32 %v339, %v340
    %343 = vst [vmem:[%s338] sm:$0x1] %v342
    %s344 = sld [smem:[#allocation6 + $0x4]]
    %s345 = scalar_lea.vmem [#allocation2], %s344
    %v346 = vld [vmem:[%s345] sm:$0x1]
    %v347 = vrot.slane %v315, 4
    %v349 = vadd.f32 %v346, %v347
    %350 = vst [vmem:[%s345] sm:$0x1] %v349
    %s351 = sld [smem:[#allocation6 + $0x5]]
    %s352 = scalar_lea.vmem [#allocation2], %s351
    %v353 = vld [vmem:[%s352] sm:$0x1]
    %v354 = vrot.slane %v315, 5
    %v356 = vadd.f32 %v353, %v354
    %357 = vst [vmem:[%s352] sm:$0x1] %v356
    %s358 = sld [smem:[#allocation6 + $0x6]]
    %s359 = scalar_lea.vmem [#allocation2], %s358
    %v360 = vld [vmem:[%s359] sm:$0x1]
    %v361 = vrot.slane %v315, 6
    %v363 = vadd.f32 %v360, %v361
    %364 = vst [vmem:[%s359] sm:$0x1] %v363
    %s365 = sld [smem:[#allocation6 + $0x7]]
    %s366 = scalar_lea.vmem [#allocation2], %s365
    %v367 = vld [vmem:[%s366] sm:$0x1]
    %v368 = vrot.slane %v315, 7
    %v370 = vadd.f32 %v367, %v368
    %371 = vst [vmem:[%s366] sm:$0x1] %v370
    %s372 = sld [smem:[#allocation7]]
    %s373 = scalar_lea.vmem [#allocation8], %s372
    %v374 = vld [vmem:[%s373] sm:$0x1]
    %375 = vst [vmem:[#allocation4] sm:$0x1] %v374
    %s376 = sld [smem:[#allocation7 + $0x1]]
    %s377 = scalar_lea.vmem [#allocation8], %s376
    %v378 = vld [vmem:[%s377] sm:$0x1]
    %379 = vst [vmem:[#allocation4 + $0x4] sm:$0x1] %v378
    %s380 = sld [smem:[#allocation7 + $0x2]]
    %s381 = scalar_lea.vmem [#allocation8], %s380
    %v382 = vld [vmem:[%s381] sm:$0x1]
    %383 = vst [vmem:[#allocation4 + $0x1] sm:$0x1] %v382
    %s384 = sld [smem:[#allocation7 + $0x3]]
    %s385 = scalar_lea.vmem [#allocation8], %s384
    %v386 = vld [vmem:[%s385] sm:$0x1]
    %387 = vst [vmem:[#allocation4 + $0x5] sm:$0x1] %v386
    %s388 = sld [smem:[#allocation7 + $0x4]]
    %s389 = scalar_lea.vmem [#allocation8], %s388
    %v390 = vld [vmem:[%s389] sm:$0x1]
    %391 = vst [vmem:[#allocation4 + $0x2] sm:$0x1] %v390
    %s392 = sld [smem:[#allocation7 + $0x5]]
    %s393 = scalar_lea.vmem [#allocation8], %s392
    %v394 = vld [vmem:[%s393] sm:$0x1]
    %395 = vst [vmem:[#allocation4 + $0x6] sm:$0x1] %v394
    %s396 = sld [smem:[#allocation7 + $0x6]]
    %s397 = scalar_lea.vmem [#allocation8], %s396
    %v398 = vld [vmem:[%s397] sm:$0x1]
    %399 = vst [vmem:[#allocation4 + $0x3] sm:$0x1] %v398
    %s400 = sld [smem:[#allocation7 + $0x7]]
    %s401 = scalar_lea.vmem [#allocation8], %s400
    %v402 = vld [vmem:[%s401] sm:$0x1]
    %403 = vst [vmem:[#allocation4 + $0x7] sm:$0x1] %v402
    %v404 = vld [vmem:[#allocation4] sm:$0xff]
    %v405 = vld [vmem:[#allocation16] sm:$0xff]
    %v406 = vld [vmem:[#allocation16 + $0x8] sm:$0xff]
    %v407 = vld [vmem:[#allocation16 + $0x10] sm:$0xff]
    %v408 = vld [vmem:[#allocation16 + $0x18] sm:$0xff]
    %v409 = vld [vmem:[#allocation16 + $0x20] sm:$0xff]
    %v410 = vld [vmem:[#allocation16 + $0x28] sm:$0xff]
    %v411 = vld [vmem:[#allocation16 + $0x30] sm:$0xff]
    %v412 = vld [vmem:[#allocation16 + $0x38] sm:$0xff]
    %v413 = vld [vmem:[#allocation16 + $0x40] sm:$0xff]
    %v414 = vld [vmem:[#allocation16 + $0x48] sm:$0xff]
    %v415 = vld [vmem:[#allocation16 + $0x50] sm:$0xff]
    %v416 = vld [vmem:[#allocation16 + $0x58] sm:$0xff]
    %v417 = vld [vmem:[#allocation16 + $0x60] sm:$0xff]
    %v418 = vld [vmem:[#allocation16 + $0x68] sm:$0xff]
    %v419 = vld [vmem:[#allocation16 + $0x70] sm:$0xff]
    %v420 = vld [vmem:[#allocation16 + $0x78] sm:$0xff]
    %v421 = vld [vmem:[#allocation16 + $0x80] sm:$0xff]
    %v422 = vld [vmem:[#allocation16 + $0x88] sm:$0xff]
    %v423 = vld [vmem:[#allocation16 + $0x90] sm:$0xff]
    %v424 = vld [vmem:[#allocation16 + $0x98] sm:$0xff]
    %v425 = vld [vmem:[#allocation16 + $0xa0] sm:$0xff]
    %v426 = vld [vmem:[#allocation16 + $0xa8] sm:$0xff]
    %v427 = vld [vmem:[#allocation16 + $0xb0] sm:$0xff]
    %v428 = vld [vmem:[#allocation16 + $0xb8] sm:$0xff]
    %v429 = vld [vmem:[#allocation16 + $0xc0] sm:$0xff]
    %v430 = vld [vmem:[#allocation16 + $0xc8] sm:$0xff]
    %v431 = vld [vmem:[#allocation16 + $0xd0] sm:$0xff]
    %v432 = vld [vmem:[#allocation16 + $0xd8] sm:$0xff]
    %v433 = vld [vmem:[#allocation16 + $0xe0] sm:$0xff]
    %v434 = vld [vmem:[#allocation16 + $0xe8] sm:$0xff]
    %v435 = vld [vmem:[#allocation16 + $0xf0] sm:$0xff]
    %v436 = vld [vmem:[#allocation16 + $0xf8] sm:$0xff]
    %v437 = vld [vmem:[#allocation16 + $0x100] sm:$0xff]
    %v438 = vld [vmem:[#allocation16 + $0x108] sm:$0xff]
    %v439 = vld [vmem:[#allocation16 + $0x110] sm:$0xff]
    %v440 = vld [vmem:[#allocation16 + $0x118] sm:$0xff]
    %v441 = vld [vmem:[#allocation16 + $0x120] sm:$0xff]
    %v442 = vld [vmem:[#allocation16 + $0x128] sm:$0xff]
    %v443 = vld [vmem:[#allocation16 + $0x130] sm:$0xff]
    %v444 = vld [vmem:[#allocation16 + $0x138] sm:$0xff]
    %v445 = vld [vmem:[#allocation16 + $0x140] sm:$0xff]
    %v446 = vld [vmem:[#allocation16 + $0x148] sm:$0xff]
    %v447 = vld [vmem:[#allocation16 + $0x150] sm:$0xff]
    %v448 = vld [vmem:[#allocation16 + $0x158] sm:$0xff]
    %v449 = vld [vmem:[#allocation16 + $0x160] sm:$0xff]
    %v450 = vld [vmem:[#allocation16 + $0x168] sm:$0xff]
    %v451 = vld [vmem:[#allocation16 + $0x170] sm:$0xff]
    %v452 = vld [vmem:[#allocation16 + $0x178] sm:$0xff]
    %v453 = vld [vmem:[#allocation16 + $0x180] sm:$0xff]
    %v454 = vld [vmem:[#allocation16 + $0x188] sm:$0xff]
    %v455 = vld [vmem:[#allocation16 + $0x190] sm:$0xff]
    %v456 = vld [vmem:[#allocation16 + $0x198] sm:$0xff]
    %v457 = vld [vmem:[#allocation16 + $0x1a0] sm:$0xff]
    %v458 = vld [vmem:[#allocation16 + $0x1a8] sm:$0xff]
    %v459 = vld [vmem:[#allocation16 + $0x1b0] sm:$0xff]
    %v460 = vld [vmem:[#allocation16 + $0x1b8] sm:$0xff]
    %v461 = vld [vmem:[#allocation16 + $0x1c0] sm:$0xff]
    %v462 = vld [vmem:[#allocation16 + $0x1c8] sm:$0xff]
    %v463 = vld [vmem:[#allocation16 + $0x1d0] sm:$0xff]
    %v464 = vld [vmem:[#allocation16 + $0x1d8] sm:$0xff]
    %v465 = vld [vmem:[#allocation16 + $0x1e0] sm:$0xff]
    %v466 = vld [vmem:[#allocation16 + $0x1e8] sm:$0xff]
    %v467 = vld [vmem:[#allocation16 + $0x1f0] sm:$0xff]
    %v468 = vld [vmem:[#allocation16 + $0x1f8] sm:$0xff]
    %v469 = vld [vmem:[%s8] sm:$0x3]
    %v471 = vperm.slane %v469, 0
    %v472 = vperm.slane %v469, 1
    %476 = vst [vmem:[#allocation1] ss:$2 sm:$0xff] %v404
    %v477 = vld.sshfl [vmem:[#allocation1] sm:$0xff pattern:$0x75316420]
    %v478 = vld.sshfl [vmem:[#allocation1 + $0x8] sm:$0xff pattern:$0x75316420]
    %481 = vmatpush.msra.mxu0 %v435
    %482 = vmatpush.msra.mxu0 %v433
    %483 = vmatpush.msra.mxu0 %v431
    %484 = vmatpush.msra.mxu0 %v429
    %485 = vmatpush.msra.mxu0 %v427
    %486 = vmatpush.msra.mxu0 %v425
    %487 = vmatpush.msra.mxu0 %v423
    %488 = vmatpush.msra.mxu0 %v421
    %489 = vmatpush.msra.mxu0 %v419
    %490 = vmatpush.msra.mxu0 %v417
    %491 = vmatpush.msra.mxu0 %v415
    %492 = vmatpush.msra.mxu0 %v413
    %493 = vmatpush.msra.mxu0 %v411
    %494 = vmatpush.msra.mxu0 %v409
    %495 = vmatpush.msra.mxu0 %v407
    %496 = vmatpush.msra.mxu0 %v405
    %497 = vmatmul.f32.gmra.mxu0 %v477
    %v498 = vpop.f32.mrf.mxu0
    %v499 = vadd.f32 %v471, %v498
    %500 = vdwg.mxu0
    %501 = vmatpush.msra.mxu0 %v467
    %502 = vmatpush.msra.mxu0 %v465
    %503 = vmatpush.msra.mxu0 %v463
    %504 = vmatpush.msra.mxu0 %v461
    %505 = vmatpush.msra.mxu0 %v459
    %506 = vmatpush.msra.mxu0 %v457
    %507 = vmatpush.msra.mxu0 %v455
    %508 = vmatpush.msra.mxu0 %v453
    %509 = vmatpush.msra.mxu0 %v451
    %510 = vmatpush.msra.mxu0 %v449
    %511 = vmatpush.msra.mxu0 %v447
    %512 = vmatpush.msra.mxu0 %v445
    %513 = vmatpush.msra.mxu0 %v443
    %514 = vmatpush.msra.mxu0 %v441
    %515 = vmatpush.msra.mxu0 %v439
    %516 = vmatpush.msra.mxu0 %v437
    %517 = vmatmul.f32.gmra.mxu0 %v478
    %v518 = vpop.f32.mrf.mxu0
    %v519 = vadd.f32 %v499, %v518
    %520 = vdwg.mxu0
    %521 = vmatpush.msra.mxu0 %v436
    %522 = vmatpush.msra.mxu0 %v434
    %523 = vmatpush.msra.mxu0 %v432
    %524 = vmatpush.msra.mxu0 %v430
    %525 = vmatpush.msra.mxu0 %v428
    %526 = vmatpush.msra.mxu0 %v426
    %527 = vmatpush.msra.mxu0 %v424
    %528 = vmatpush.msra.mxu0 %v422
    %529 = vmatpush.msra.mxu0 %v420
    %530 = vmatpush.msra.mxu0 %v418
    %531 = vmatpush.msra.mxu0 %v416
    %532 = vmatpush.msra.mxu0 %v414
    %533 = vmatpush.msra.mxu0 %v412
    %534 = vmatpush.msra.mxu0 %v410
    %535 = vmatpush.msra.mxu0 %v408
    %536 = vmatpush.msra.mxu0 %v406
    %537 = vmatmul.f32.gmra.mxu0 %v477
    %v538 = vpop.f32.mrf.mxu0
    %v539 = vadd.f32 %v472, %v538
    %540 = vdwg.mxu0
    %541 = vmatpush.msra.mxu0 %v468
    %542 = vmatpush.msra.mxu0 %v466
    %543 = vmatpush.msra.mxu0 %v464
    %544 = vmatpush.msra.mxu0 %v462
    %545 = vmatpush.msra.mxu0 %v460
    %546 = vmatpush.msra.mxu0 %v458
    %547 = vmatpush.msra.mxu0 %v456
    %548 = vmatpush.msra.mxu0 %v454
    %549 = vmatpush.msra.mxu0 %v452
    %550 = vmatpush.msra.mxu0 %v450
    %551 = vmatpush.msra.mxu0 %v448
    %552 = vmatpush.msra.mxu0 %v446
    %553 = vmatpush.msra.mxu0 %v444
    %554 = vmatpush.msra.mxu0 %v442
    %555 = vmatpush.msra.mxu0 %v440
    %556 = vmatpush.msra.mxu0 %v438
    %557 = vmatmul.f32.gmra.mxu0 %v478
    %v558 = vpop.f32.mrf.mxu0
    %v559 = vadd.f32 %v539, %v558
    %560 = vdwg.mxu0
    %v561 = vmax.f32 %v519, 0.0
    %v562 = vmax.f32 %v559, 0.0
    %v563 = vld [vmem:[#allocation17] sm:$0xff]
    %v564 = vld [vmem:[#allocation17 + $0x8] sm:$0xff]
    %v565 = vld [vmem:[#allocation17 + $0x10] sm:$0xff]
    %v566 = vld [vmem:[#allocation17 + $0x18] sm:$0xff]
    %v567 = vld [vmem:[#allocation17 + $0x20] sm:$0xff]
    %v568 = vld [vmem:[#allocation17 + $0x28] sm:$0xff]
    %v569 = vld [vmem:[#allocation17 + $0x30] sm:$0xff]
    %v570 = vld [vmem:[#allocation17 + $0x38] sm:$0xff]
    %v571 = vld [vmem:[#allocation17 + $0x40] sm:$0xff]
    %v572 = vld [vmem:[#allocation17 + $0x48] sm:$0xff]
    %v573 = vld [vmem:[#allocation17 + $0x50] sm:$0xff]
    %v574 = vld [vmem:[#allocation17 + $0x58] sm:$0xff]
    %v575 = vld [vmem:[#allocation17 + $0x60] sm:$0xff]
    %v576 = vld [vmem:[#allocation17 + $0x68] sm:$0xff]
    %v577 = vld [vmem:[#allocation17 + $0x70] sm:$0xff]
    %v578 = vld [vmem:[#allocation17 + $0x78] sm:$0xff]
    %v579 = vld [vmem:[#allocation17 + $0x80] sm:$0xff]
    %v580 = vld [vmem:[#allocation17 + $0x88] sm:$0xff]
    %v581 = vld [vmem:[#allocation17 + $0x90] sm:$0xff]
    %v582 = vld [vmem:[#allocation17 + $0x98] sm:$0xff]
    %v583 = vld [vmem:[#allocation17 + $0xa0] sm:$0xff]
    %v584 = vld [vmem:[#allocation17 + $0xa8] sm:$0xff]
    %v585 = vld [vmem:[#allocation17 + $0xb0] sm:$0xff]
    %v586 = vld [vmem:[#allocation17 + $0xb8] sm:$0xff]
    %v587 = vld [vmem:[#allocation17 + $0xc0] sm:$0xff]
    %v588 = vld [vmem:[#allocation17 + $0xc8] sm:$0xff]
    %v589 = vld [vmem:[#allocation17 + $0xd0] sm:$0xff]
    %v590 = vld [vmem:[#allocation17 + $0xd8] sm:$0xff]
    %v591 = vld [vmem:[#allocation17 + $0xe0] sm:$0xff]
    %v592 = vld [vmem:[#allocation17 + $0xe8] sm:$0xff]
    %v593 = vld [vmem:[#allocation17 + $0xf0] sm:$0xff]
    %v594 = vld [vmem:[#allocation17 + $0xf8] sm:$0xff]
    %v595 = vld [vmem:[#allocation17 + $0x100] sm:$0xff]
    %v596 = vld [vmem:[#allocation17 + $0x108] sm:$0xff]
    %v597 = vld [vmem:[#allocation17 + $0x110] sm:$0xff]
    %v598 = vld [vmem:[#allocation17 + $0x118] sm:$0xff]
    %v599 = vld [vmem:[#allocation17 + $0x120] sm:$0xff]
    %v600 = vld [vmem:[#allocation17 + $0x128] sm:$0xff]
    %v601 = vld [vmem:[#allocation17 + $0x130] sm:$0xff]
    %v602 = vld [vmem:[#allocation17 + $0x138] sm:$0xff]
    %v603 = vld [vmem:[#allocation17 + $0x140] sm:$0xff]
    %v604 = vld [vmem:[#allocation17 + $0x148] sm:$0xff]
    %v605 = vld [vmem:[#allocation17 + $0x150] sm:$0xff]
    %v606 = vld [vmem:[#allocation17 + $0x158] sm:$0xff]
    %v607 = vld [vmem:[#allocation17 + $0x160] sm:$0xff]
    %v608 = vld [vmem:[#allocation17 + $0x168] sm:$0xff]
    %v609 = vld [vmem:[#allocation17 + $0x170] sm:$0xff]
    %v610 = vld [vmem:[#allocation17 + $0x178] sm:$0xff]
    %v611 = vld [vmem:[#allocation17 + $0x180] sm:$0xff]
    %v612 = vld [vmem:[#allocation17 + $0x188] sm:$0xff]
    %v613 = vld [vmem:[#allocation17 + $0x190] sm:$0xff]
    %v614 = vld [vmem:[#allocation17 + $0x198] sm:$0xff]
    %v615 = vld [vmem:[#allocation17 + $0x1a0] sm:$0xff]
    %v616 = vld [vmem:[#allocation17 + $0x1a8] sm:$0xff]
    %v617 = vld [vmem:[#allocation17 + $0x1b0] sm:$0xff]
    %v618 = vld [vmem:[#allocation17 + $0x1b8] sm:$0xff]
    %v619 = vld [vmem:[#allocation17 + $0x1c0] sm:$0xff]
    %v620 = vld [vmem:[#allocation17 + $0x1c8] sm:$0xff]
    %v621 = vld [vmem:[#allocation17 + $0x1d0] sm:$0xff]
    %v622 = vld [vmem:[#allocation17 + $0x1d8] sm:$0xff]
    %v623 = vld [vmem:[#allocation17 + $0x1e0] sm:$0xff]
    %v624 = vld [vmem:[#allocation17 + $0x1e8] sm:$0xff]
    %v625 = vld [vmem:[#allocation17 + $0x1f0] sm:$0xff]
    %v626 = vld [vmem:[#allocation17 + $0x1f8] sm:$0xff]
    %v627 = vld [vmem:[%s10] sm:$0x3]
    %v629 = vperm.slane %v627, 0
    %v630 = vperm.slane %v627, 1
    %633 = vmatpush.msra.mxu0 %v593
    %634 = vmatpush.msra.mxu0 %v591
    %635 = vmatpush.msra.mxu0 %v589
    %636 = vmatpush.msra.mxu0 %v587
    %637 = vmatpush.msra.mxu0 %v585
    %638 = vmatpush.msra.mxu0 %v583
    %639 = vmatpush.msra.mxu0 %v581
    %640 = vmatpush.msra.mxu0 %v579
    %641 = vmatpush.msra.mxu0 %v577
    %642 = vmatpush.msra.mxu0 %v575
    %643 = vmatpush.msra.mxu0 %v573
    %644 = vmatpush.msra.mxu0 %v571
    %645 = vmatpush.msra.mxu0 %v569
    %646 = vmatpush.msra.mxu0 %v567
    %647 = vmatpush.msra.mxu0 %v565
    %648 = vmatpush.msra.mxu0 %v563
    %649 = vmatmul.f32.gmra.mxu0 %v561
    %v650 = vpop.f32.mrf.mxu0
    %v651 = vadd.f32 %v629, %v650
    %652 = vdwg.mxu0
    %653 = vmatpush.msra.mxu0 %v625
    %654 = vmatpush.msra.mxu0 %v623
    %655 = vmatpush.msra.mxu0 %v621
    %656 = vmatpush.msra.mxu0 %v619
    %657 = vmatpush.msra.mxu0 %v617
    %658 = vmatpush.msra.mxu0 %v615
    %659 = vmatpush.msra.mxu0 %v613
    %660 = vmatpush.msra.mxu0 %v611
    %661 = vmatpush.msra.mxu0 %v609
    %662 = vmatpush.msra.mxu0 %v607
    %663 = vmatpush.msra.mxu0 %v605
    %664 = vmatpush.msra.mxu0 %v603
    %665 = vmatpush.msra.mxu0 %v601
    %666 = vmatpush.msra.mxu0 %v599
    %667 = vmatpush.msra.mxu0 %v597
    %668 = vmatpush.msra.mxu0 %v595
    %669 = vmatmul.f32.gmra.mxu0 %v562
    %v670 = vpop.f32.mrf.mxu0
    %v671 = vadd.f32 %v651, %v670
    %672 = vdwg.mxu0
    %673 = vmatpush.msra.mxu0 %v594
    %674 = vmatpush.msra.mxu0 %v592
    %675 = vmatpush.msra.mxu0 %v590
    %676 = vmatpush.msra.mxu0 %v588
    %677 = vmatpush.msra.mxu0 %v586
    %678 = vmatpush.msra.mxu0 %v584
    %679 = vmatpush.msra.mxu0 %v582
    %680 = vmatpush.msra.mxu0 %v580
    %681 = vmatpush.msra.mxu0 %v578
    %682 = vmatpush.msra.mxu0 %v576
    %683 = vmatpush.msra.mxu0 %v574
    %684 = vmatpush.msra.mxu0 %v572
    %685 = vmatpush.msra.mxu0 %v570
    %686 = vmatpush.msra.mxu0 %v568
    %687 = vmatpush.msra.mxu0 %v566
    %688 = vmatpush.msra.mxu0 %v564
    %689 = vmatmul.f32.gmra.mxu0 %v561
    %v690 = vpop.f32.mrf.mxu0
    %v691 = vadd.f32 %v630, %v690
    %692 = vdwg.mxu0
    %693 = vmatpush.msra.mxu0 %v626
    %694 = vmatpush.msra.mxu0 %v624
    %695 = vmatpush.msra.mxu0 %v622
    %696 = vmatpush.msra.mxu0 %v620
    %697 = vmatpush.msra.mxu0 %v618
    %698 = vmatpush.msra.mxu0 %v616
    %699 = vmatpush.msra.mxu0 %v614
    %700 = vmatpush.msra.mxu0 %v612
    %701 = vmatpush.msra.mxu0 %v610
    %702 = vmatpush.msra.mxu0 %v608
    %703 = vmatpush.msra.mxu0 %v606
    %704 = vmatpush.msra.mxu0 %v604
    %705 = vmatpush.msra.mxu0 %v602
    %706 = vmatpush.msra.mxu0 %v600
    %707 = vmatpush.msra.mxu0 %v598
    %708 = vmatpush.msra.mxu0 %v596
    %709 = vmatmul.f32.gmra.mxu0 %v562
    %v710 = vpop.f32.mrf.mxu0
    %v711 = vadd.f32 %v691, %v710
    %712 = vdwg.mxu0
    %s713 = sld [smem:[#allocation7]]
    %s714 = scalar_lea.vmem [#allocation2], %s713
    %v715 = vld [vmem:[%s714] sm:$0x1]
    %v716 = vadd.f32 %v715, %v671
    %717 = vst [vmem:[%s714] sm:$0x1] %v716
    %s718 = sld [smem:[#allocation7 + $0x1]]
    %s719 = scalar_lea.vmem [#allocation2], %s718
    %v720 = vld [vmem:[%s719] sm:$0x1]
    %v721 = vadd.f32 %v720, %v711
    %722 = vst [vmem:[%s719] sm:$0x1] %v721
    %s723 = sld [smem:[#allocation7 + $0x2]]
    %s724 = scalar_lea.vmem [#allocation2], %s723
    %v725 = vld [vmem:[%s724] sm:$0x1]
    %v727 = vrot.slane %v671, 1
    %v729 = vadd.f32 %v725, %v727
    %730 = vst [vmem:[%s724] sm:$0x1] %v729
    %s731 = sld [smem:[#allocation7 + $0x3]]
    %s732 = scalar_lea.vmem [#allocation2], %s731
    %v733 = vld [vmem:[%s732] sm:$0x1]
    %v735 = vrot.slane %v711, 1
    %v737 = vadd.f32 %v733, %v735
    %738 = vst [vmem:[%s732] sm:$0x1] %v737
    %s739 = sld [smem:[#allocation7 + $0x4]]
    %s740 = scalar_lea.vmem [#allocation2], %s739
    %v741 = vld [vmem:[%s740] sm:$0x1]
    %v742 = vrot.slane %v671, 2
    %v744 = vadd.f32 %v741, %v742
    %745 = vst [vmem:[%s740] sm:$0x1] %v744
    %s746 = sld [smem:[#allocation7 + $0x5]]
    %s747 = scalar_lea.vmem [#allocation2], %s746
    %v748 = vld [vmem:[%s747] sm:$0x1]
    %v749 = vrot.slane %v711, 2
    %v751 = vadd.f32 %v748, %v749
    %752 = vst [vmem:[%s747] sm:$0x1] %v751
    %s753 = sld [smem:[#allocation7 + $0x6]]
    %s754 = scalar_lea.vmem [#allocation2], %s753
    %v755 = vld [vmem:[%s754] sm:$0x1]
    %v756 = vrot.slane %v671, 3
    %v758 = vadd.f32 %v755, %v756
    %759 = vst [vmem:[%s754] sm:$0x1] %v758
    %s760 = sld [smem:[#allocation7 + $0x7]]
    %s761 = scalar_lea.vmem [#allocation2], %s760
    %v762 = vld [vmem:[%s761] sm:$0x1]
    %v763 = vrot.slane %v711, 3
    %v765 = vadd.f32 %v762, %v763
    %766 = vst [vmem:[%s761] sm:$0x1] %v765
    %v767 = vld [vmem:[#allocation2] sm:$0xff]
    %v768 = vld [vmem:[#allocation2 + $0x8] sm:$0xff]
    %v769 = vld [vmem:[#allocation8] sm:$0xff]
    %v770 = vld [vmem:[#allocation8 + $0x8] sm:$0xff]
    %v771 = vld [vmem:[#allocation19] sm:$0xff]
    %v772 = vld [vmem:[#allocation19 + $0x8] sm:$0xff]
    %v773 = vld [vmem:[#allocation19 + $0x10] sm:$0xff]
    %v774 = vld [vmem:[#allocation19 + $0x18] sm:$0xff]
    %v775 = vld [vmem:[#allocation19 + $0x20] sm:$0xff]
    %v776 = vld [vmem:[#allocation19 + $0x28] sm:$0xff]
    %v777 = vld [vmem:[#allocation19 + $0x30] sm:$0xff]
    %v778 = vld [vmem:[#allocation19 + $0x38] sm:$0xff]
    %v779 = vld [vmem:[#allocation19 + $0x40] sm:$0xff]
    %v780 = vld [vmem:[#allocation19 + $0x48] sm:$0xff]
    %v781 = vld [vmem:[#allocation19 + $0x50] sm:$0xff]
    %v782 = vld [vmem:[#allocation19 + $0x58] sm:$0xff]
    %v783 = vld [vmem:[#allocation19 + $0x60] sm:$0xff]
    %v784 = vld [vmem:[#allocation19 + $0x68] sm:$0xff]
    %v785 = vld [vmem:[#allocation19 + $0x70] sm:$0xff]
    %v786 = vld [vmem:[#allocation19 + $0x78] sm:$0xff]
    %787 = vmatpush.msra.mxu0 %v786
    %788 = vmatpush.msra.mxu0 %v785
    %789 = vmatpush.msra.mxu0 %v784
    %790 = vmatpush.msra.mxu0 %v783
    %791 = vmatpush.msra.mxu0 %v782
    %792 = vmatpush.msra.mxu0 %v781
    %793 = vmatpush.msra.mxu0 %v780
    %794 = vmatpush.msra.mxu0 %v779
    %795 = vmatpush.msra.mxu0 %v778
    %796 = vmatpush.msra.mxu0 %v777
    %797 = vmatpush.msra.mxu0 %v776
    %798 = vmatpush.msra.mxu0 %v775
    %799 = vmatpush.msra.mxu0 %v774
    %800 = vmatpush.msra.mxu0 %v773
    %801 = vmatpush.msra.mxu0 %v772
    %802 = vmatpush.msra.mxu0 %v771
    %803 = vmatmul.f32.gmra.mxu0 %v767
    %v804 = vpop.f32.mrf.mxu0
    %v805 = vadd.f32 0.0, %v804
    %806 = vmatmul.f32.gmra.mxu0 %v768
    %v807 = vpop.f32.mrf.mxu0
    %v808 = vadd.f32 0.0, %v807
    %809 = vdwg.mxu0
    %v810 = vld [vmem:[#allocation20] sm:$0xff]
    %v811 = vld [vmem:[#allocation20 + $0x8] sm:$0xff]
    %v812 = vld [vmem:[#allocation20 + $0x10] sm:$0xff]
    %v813 = vld [vmem:[#allocation20 + $0x18] sm:$0xff]
    %v814 = vld [vmem:[#allocation20 + $0x20] sm:$0xff]
    %v815 = vld [vmem:[#allocation20 + $0x28] sm:$0xff]
    %v816 = vld [vmem:[#allocation20 + $0x30] sm:$0xff]
    %v817 = vld [vmem:[#allocation20 + $0x38] sm:$0xff]
    %v818 = vld [vmem:[#allocation20 + $0x40] sm:$0xff]
    %v819 = vld [vmem:[#allocation20 + $0x48] sm:$0xff]
    %v820 = vld [vmem:[#allocation20 + $0x50] sm:$0xff]
    %v821 = vld [vmem:[#allocation20 + $0x58] sm:$0xff]
    %v822 = vld [vmem:[#allocation20 + $0x60] sm:$0xff]
    %v823 = vld [vmem:[#allocation20 + $0x68] sm:$0xff]
    %v824 = vld [vmem:[#allocation20 + $0x70] sm:$0xff]
    %v825 = vld [vmem:[#allocation20 + $0x78] sm:$0xff]
    %v826 = vld [vmem:[#allocation20 + $0x80] sm:$0xff]
    %v827 = vld [vmem:[#allocation20 + $0x88] sm:$0xff]
    %v828 = vld [vmem:[#allocation20 + $0x90] sm:$0xff]
    %v829 = vld [vmem:[#allocation20 + $0x98] sm:$0xff]
    %v830 = vld [vmem:[#allocation20 + $0xa0] sm:$0xff]
    %v831 = vld [vmem:[#allocation20 + $0xa8] sm:$0xff]
    %v832 = vld [vmem:[#allocation20 + $0xb0] sm:$0xff]
    %v833 = vld [vmem:[#allocation20 + $0xb8] sm:$0xff]
    %v834 = vld [vmem:[#allocation20 + $0xc0] sm:$0xff]
    %v835 = vld [vmem:[#allocation20 + $0xc8] sm:$0xff]
    %v836 = vld [vmem:[#allocation20 + $0xd0] sm:$0xff]
    %v837 = vld [vmem:[#allocation20 + $0xd8] sm:$0xff]
    %v838 = vld [vmem:[#allocation20 + $0xe0] sm:$0xff]
    %v839 = vld [vmem:[#allocation20 + $0xe8] sm:$0xff]
    %v840 = vld [vmem:[#allocation20 + $0xf0] sm:$0xff]
    %v841 = vld [vmem:[#allocation20 + $0xf8] sm:$0xff]
    %842 = vmatpush.msra.mxu0 %v841
    %843 = vmatpush.msra.mxu0 %v840
    %844 = vmatpush.msra.mxu0 %v839
    %845 = vmatpush.msra.mxu0 %v838
    %846 = vmatpush.msra.mxu0 %v837
    %847 = vmatpush.msra.mxu0 %v836
    %848 = vmatpush.msra.mxu0 %v835
    %849 = vmatpush.msra.mxu0 %v834
    %850 = vmatpush.msra.mxu0 %v833
    %851 = vmatpush.msra.mxu0 %v832
    %852 = vmatpush.msra.mxu0 %v831
    %853 = vmatpush.msra.mxu0 %v830
    %854 = vmatpush.msra.mxu0 %v829
    %855 = vmatpush.msra.mxu0 %v828
    %856 = vmatpush.msra.mxu0 %v827
    %857 = vmatpush.msra.mxu0 %v826
    %858 = vmatmul.f32.gmra.mxu0 %v769
    %v859 = vpop.f32.mrf.mxu0
    %v860 = vadd.f32 0.0, %v859
    %861 = vmatmul.f32.gmra.mxu0 %v770
    %v862 = vpop.f32.mrf.mxu0
    %v863 = vadd.f32 0.0, %v862
    %864 = vdwg.mxu0
    %865 = vmatpush.msra.mxu0 %v825
    %866 = vmatpush.msra.mxu0 %v824
    %867 = vmatpush.msra.mxu0 %v823
    %868 = vmatpush.msra.mxu0 %v822
    %869 = vmatpush.msra.mxu0 %v821
    %870 = vmatpush.msra.mxu0 %v820
    %871 = vmatpush.msra.mxu0 %v819
    %872 = vmatpush.msra.mxu0 %v818
    %873 = vmatpush.msra.mxu0 %v817
    %874 = vmatpush.msra.mxu0 %v816
    %875 = vmatpush.msra.mxu0 %v815
    %876 = vmatpush.msra.mxu0 %v814
    %877 = vmatpush.msra.mxu0 %v813
    %878 = vmatpush.msra.mxu0 %v812
    %879 = vmatpush.msra.mxu0 %v811
    %880 = vmatpush.msra.mxu0 %v810
    %881 = vmatmul.f32.gmra.mxu0 %v805
    %v882 = vpop.f32.mrf.mxu0
    %v883 = vadd.f32 %v860, %v882
    %884 = vmatmul.f32.gmra.mxu0 %v808
    %v885 = vpop.f32.mrf.mxu0
    %v886 = vadd.f32 %v863, %v885
    %887 = vdwg.mxu0
    %v888 = vld [vmem:[%s13] sm:$0x1]
    %v890 = vperm.slane %v888, 0
    %v892 = vadd.f32 %v883, %v890
    %v893 = vadd.f32 %v886, %v890
    %v894 = vmax.f32 %v892, 0.0
    %v895 = vmax.f32 %v893, 0.0
    %v896 = vld [vmem:[#allocation22] sm:$0xff]
    %v897 = vld [vmem:[#allocation22 + $0x8] sm:$0xff]
    %v898 = vld [vmem:[#allocation22 + $0x10] sm:$0xff]
    %v899 = vld [vmem:[#allocation22 + $0x18] sm:$0xff]
    %v900 = vld [vmem:[#allocation22 + $0x20] sm:$0xff]
    %v901 = vld [vmem:[#allocation22 + $0x28] sm:$0xff]
    %v902 = vld [vmem:[#allocation22 + $0x30] sm:$0xff]
    %v903 = vld [vmem:[#allocation22 + $0x38] sm:$0xff]
    %v904 = vld [vmem:[#allocation22 + $0x40] sm:$0xff]
    %v905 = vld [vmem:[#allocation22 + $0x48] sm:$0xff]
    %v906 = vld [vmem:[#allocation22 + $0x50] sm:$0xff]
    %v907 = vld [vmem:[#allocation22 + $0x58] sm:$0xff]
    %v908 = vld [vmem:[#allocation22 + $0x60] sm:$0xff]
    %v909 = vld [vmem:[#allocation22 + $0x68] sm:$0xff]
    %v910 = vld [vmem:[#allocation22 + $0x70] sm:$0xff]
    %v911 = vld [vmem:[#allocation22 + $0x78] sm:$0xff]
    %v912 = vld [vmem:[%s15] sm:$0x1]
    %v914 = vperm.slane %v912, 0
    %916 = vmatpush.msra.mxu0 %v911
    %917 = vmatpush.msra.mxu0 %v910
    %918 = vmatpush.msra.mxu0 %v909
    %919 = vmatpush.msra.mxu0 %v908
    %920 = vmatpush.msra.mxu0 %v907
    %921 = vmatpush.msra.mxu0 %v906
    %922 = vmatpush.msra.mxu0 %v905
    %923 = vmatpush.msra.mxu0 %v904
    %924 = vmatpush.msra.mxu0 %v903
    %925 = vmatpush.msra.mxu0 %v902
    %926 = vmatpush.msra.mxu0 %v901
    %927 = vmatpush.msra.mxu0 %v900
    %928 = vmatpush.msra.mxu0 %v899
    %929 = vmatpush.msra.mxu0 %v898
    %930 = vmatpush.msra.mxu0 %v897
    %931 = vmatpush.msra.mxu0 %v896
    %932 = vmatmul.f32.gmra.mxu0 %v894
    %v933 = vpop.f32.mrf.mxu0
    %v934 = vadd.f32 %v914, %v933
    %935 = vmatmul.f32.gmra.mxu0 %v895
    %v936 = vpop.f32.mrf.mxu0
    %v937 = vadd.f32 %v914, %v936
    %938 = vdwg.mxu0
    %939 = vst [vmem:[#allocation23] sm:$0xff] %v934
    %940 = vst [vmem:[#allocation23 + $0x8] sm:$0xff] %v937
    // Predicated region
    $region94: #{tpu_custom_call.1} parent=1 // pred_check
      _
    $region95: #{tpu_custom_call.1} parent=1 // pred_check_branch
      %942 = sbr.rel (0) target = $region97
    $region96: #{tpu_custom_call.1} parent=1 // pred_region
      %944 = vsyncadd [#allocation10], 0
      %s945 = sshll.u32 [#allocation23], 4
      %s946 = int_to_ptr.vmem [resolvable:$true] %s945
      %s947 = sshll.u32 %s16, 4
      %s948 = int_to_ptr.hbm [resolvable:$true] %s947
      %953 = dma.vmem_to_hbm [thread:$0]  %s946, 256, %s948, [#allocation10], 128, 128, 8
    $region97: #{tpu_custom_call.1} parent=1 // pred_fallthru
      _
    // Predicated region
    $region98: #{tpu_custom_call.1} parent=1 // pred_check
      _
    $region99: #{tpu_custom_call.1} parent=1 // pred_check_branch
      %955 = sbr.rel (0) target = $region101
    $region100: #{tpu_custom_call.1} parent=1 // pred_region
      %957 = dma.done [#allocation10], 256
    $region101: #{tpu_custom_call.1} parent=1 // pred_fallthru
      _
    %958 = vsyncpa [#allocation9], 1
    %959 = vsyncpa [#allocation12], 1
    %960 = vsyncpa [#allocation15], 1
    %961 = vsyncpa [#allocation18], 1
    %962 = vsyncpa [#allocation21], 1
    %963 = vsyncpa [#allocation10], 1

</llo_original>
